<compile_context>
chip_gen: v6e
topology: v6e:2x2x1
jax: 0.10.0
libtpu: 0.0.40
codegen_flags: <defaults>
</compile_context>

<pallas_src>
import functools

import jax
import jax.numpy as jnp
from jax import lax
from jax.experimental import pallas as pl
from jax.experimental.pallas import tpu as pltpu


# ----------------------------- Pallas kernel --------------------------------
def _transformer_block_kernel(
    x_ref,                  # (B*T, C)   f32 activations (batch folded into M)
    ln1g_ref, ln1b_ref,     # (1, C)     f32
    ln2g_ref, ln2b_ref,     # (1, C)     f32
    wqkv_ref,               # (C, 3C)    compute dtype, [Wq | Wk | Wv]
    wp_ref, bp_ref,         # (C, C) cd, (1, C)  f32
    w1_ref, b1_ref,         # (C, 4C) cd, (1, 4C) f32
    w2_ref, b2_ref,         # (4C, C) cd, (1, C)  f32
    o_ref,                  # (B, T*C)   f32 lane-dense output
    *, batch: int, seq_len: int, num_heads: int, compute_dtype,
):
    B, T, H = batch, seq_len, num_heads
    cdt = compute_dtype
    x = x_ref[...]                       # (B*T, C) f32 residual stream
    BT, C = x.shape
    hs = C // H
    eps = 1e-5

    def layernorm(h, g, b):
        mu = jnp.mean(h, axis=-1, keepdims=True)
        var = jnp.mean((h - mu) ** 2, axis=-1, keepdims=True)   # biased, as torch
        return (h - mu) * lax.rsqrt(var + eps) * g + b

    # ---------------- self-attention branch (pre-LN) ----------------
    xn = layernorm(x, ln1g_ref[0], ln1b_ref[0])                  # (BT, C) f32

    # Fused QKV: one MXU matmul instead of three (f32 accumulation on the MXU).
    qkv = jnp.dot(xn.astype(cdt), wqkv_ref[...],
                  preferred_element_type=jnp.float32)            # (BT, 3C) f32

    # Gather per-(batch, head) tiles onto a single leading batch axis so the
    # whole attention is two batched einsums.  All slices are static (T, hs)
    # tiles concatenated along the cheap leading axis — no transposes, no
    # lane-dim data movement.
    def to_heads(m):                     # (BT, C) -> (B*H, T, hs)
        parts = [m[b * T:(b + 1) * T, h * hs:(h + 1) * hs][None]
                 for b in range(B) for h in range(H)]
        return jnp.concatenate(parts, axis=0)

    q = to_heads(qkv[:, 0 * C:1 * C]).astype(cdt)                # (B*H, T, hs)
    k = to_heads(qkv[:, 1 * C:2 * C]).astype(cdt)
    v = to_heads(qkv[:, 2 * C:3 * C]).astype(cdt)

    # Causal mask folded into a single additive bias (built once per launch —
    # the grid is empty so this is not repeated per batch element).
    row = lax.broadcasted_iota(jnp.int32, (T, T), 0)
    col = lax.broadcasted_iota(jnp.int32, (T, T), 1)
    mask_bias = jnp.where(row >= col, 0.0, -1e30).astype(jnp.float32)   # (T, T)

    # NOTE: the reference scales by C ** -0.5 (full embed dim), not head_size.
    scale = C ** (-0.5)

    scores = jnp.einsum("bqd,bkd->bqk", q, k,
                        preferred_element_type=jnp.float32) * scale     # (B*H,T,T)
    scores = scores + mask_bias                                  # broadcast over B*H
    scores = scores - jnp.max(scores, axis=-1, keepdims=True)
    p = jnp.exp(scores)
    denom = jnp.sum(p, axis=-1, keepdims=True)
    p = p * pl.reciprocal(denom, approx=True)                    # EUP slot, ~free

    ctx = jnp.einsum("bqk,bkd->bqd", p.astype(cdt), v,
                     preferred_element_type=jnp.float32)         # (B*H, T, hs)

    # Output projection: accumulate per-head row-blocks of Wp.  Mathematically
    # identical to concat(heads) @ Wp, but with no lane-dim concatenate.
    wp = wp_ref[...]
    sa = jnp.zeros((BT, C), jnp.float32)
    for h in range(H):
        ctx_h = jnp.concatenate([ctx[b * H + h] for b in range(B)], axis=0)  # (BT, hs)
        sa = sa + jnp.dot(ctx_h.astype(cdt), wp[h * hs:(h + 1) * hs, :],
                          preferred_element_type=jnp.float32)
    sa = sa + bp_ref[0]

    x = x + sa                                                   # residual 1

    # ---------------- feed-forward branch (pre-LN) ----------------
    xn2 = layernorm(x, ln2g_ref[0], ln2b_ref[0])
    h1 = jnp.dot(xn2.astype(cdt), w1_ref[...],
                 preferred_element_type=jnp.float32) + b1_ref[0]
    h1 = jnp.maximum(h1, 0.0)                                    # ReLU
    h2 = jnp.dot(h1.astype(cdt), w2_ref[...],
                 preferred_element_type=jnp.float32) + b2_ref[0]
    y = x + h2                                                   # (BT, C) f32, residual 2

    # Lane-dense store: assemble (B, T*C) (last dim 256 lanes) so the output
    # block is written with full-width stores instead of 32-lane masked stores.
    out_rows = []
    for b in range(B):
        out_rows.append(jnp.concatenate(
            [y[b * T + t:b * T + t + 1, :] for t in range(T)], axis=1))      # (1, T*C)
    o_ref[...] = jnp.concatenate(out_rows, axis=0).astype(o_ref.dtype)       # (B, T*C)


# ------------------------------- wrapper -------------------------------------
def transformer_block(x, params, *, num_heads, compute_dtype=jnp.float32):
    """Pallas forward pass of TransformerBlock.  x: (B, T, C) float32."""
    B, T, C = x.shape

    # Fuse the head-stacked q/k/v projection weights into one (C, 3C) operand.
    wqkv = jnp.concatenate([params["wq"], params["wk"], params["wv"]], axis=1)

    # MXU operands in compute_dtype (bf16 recommended on v6e/v7x); accumulation
    # stays f32 via preferred_element_type inside the kernel.  LayerNorm params
    # and biases stay f32.
    wqkv = wqkv.astype(compute_dtype)
    wp = params["wp"].astype(compute_dtype)
    w1 = params["w1"].astype(compute_dtype)
    w2 = params["w2"].astype(compute_dtype)

    inputs = [
        x.reshape(B * T, C),             # fold batch into the matmul M dimension
        params["ln1_g"], params["ln1_b"],
        params["ln2_g"], params["ln2_b"],
        wqkv,
        wp, params["bp"],
        w1, params["b1"],
        w2, params["b2"],
    ]

    kernel = functools.partial(
        _transformer_block_kernel,
        batch=B, seq_len=T, num_heads=num_heads, compute_dtype=compute_dtype)

    vmem_spec = pl.BlockSpec(memory_space=pltpu.MemorySpace.VMEM)
    out_wide = pl.pallas_call(
        kernel,
        # Lane-dense output: last dim T*C = 256 >= 128; reshaped back below.
        out_shape=jax.ShapeDtypeStruct((B, T * C), x.dtype),
        in_specs=[vmem_spec] * len(inputs),
        out_specs=vmem_spec,
        compiler_params=pltpu.CompilerParams(
            # Explicit VMEM budget; comfortably under v7x's 64 MiB per core.
            vmem_limit_bytes=32 * 1024 * 1024,
        ),
    )(*inputs)
    return out_wide.reshape(B, T, C)


# --------------------------- pure-JAX reference -------------------------------
def transformer_block_ref(x, params, *, num_heads):
    B, T, C = x.shape
    hs = C // num_heads
    eps = 1e-5

    def ln(h, g, b):
        mu = jnp.mean(h, axis=-1, keepdims=True)
        var = jnp.mean((h - mu) ** 2, axis=-1, keepdims=True)
        return (h - mu) / jnp.sqrt(var + eps) * g + b

    xn = ln(x, params["ln1_g"][0], params["ln1_b"][0])
    q = xn @ params["wq"]
    k = xn @ params["wk"]
    v = xn @ params["wv"]
    tril = jnp.tril(jnp.ones((T, T), bool))
    scale = C ** (-0.5)
    outs = []
    for h in range(num_heads):
        qh = q[..., h * hs:(h + 1) * hs]
        kh = k[..., h * hs:(h + 1) * hs]
        vh = v[..., h * hs:(h + 1) * hs]
        wei = jnp.einsum("btd,bsd->bts", qh, kh) * scale
        wei = jnp.where(tril, wei, -jnp.inf)
        wei = jax.nn.softmax(wei, axis=-1)
        outs.append(jnp.einsum("bts,bsd->btd", wei, vh))
    sa = jnp.concatenate(outs, axis=-1) @ params["wp"] + params["bp"][0]
    x = x + sa
    xn2 = ln(x, params["ln2_g"][0], params["ln2_b"][0])
    h1 = jnp.maximum(xn2 @ params["w1"] + params["b1"][0], 0.0)
    return x + (h1 @ params["w2"] + params["b2"][0])


# --------------------------------- main ---------------------------------------
if __name__ == "__main__":
    B, T, C = 2, 8, 32          # batch, block_size (seq), num_embed
    NUM_HEADS = 4

    key = jax.random.PRNGKey(0)
    ks = jax.random.split(key, 16)

    def rnd(k, shape, scale=0.1):
        return (scale * jax.random.normal(k, shape)).astype(jnp.float32)

    params = {
        "ln1_g": 1.0 + rnd(ks[0], (1, C), 0.05),
        "ln1_b": rnd(ks[1], (1, C), 0.05),
        "ln2_g": 1.0 + rnd(ks[2], (1, C), 0.05),
        "ln2_b": rnd(ks[3], (1, C), 0.05),
        # q/k/v weights: heads stacked along the output dim, stored as (in, out)
        "wq": rnd(ks[4], (C, C)),
        "wk": rnd(ks[5], (C, C)),
        "wv": rnd(ks[6], (C, C)),
        "wp": rnd(ks[7], (C, C)),
        "bp": rnd(ks[8], (1, C)),
        "w1": rnd(ks[9], (C, 4 * C)),
        "b1": rnd(ks[10], (1, 4 * C)),
        "w2": rnd(ks[11], (4 * C, C)),
        "b2": rnd(ks[12], (1, C)),
    }

    x = rnd(ks[13], (B, T, C), 1.0)

    ref = transformer_block_ref(x, params, num_heads=NUM_HEADS)

    # f32 MXU path (approx reciprocal in softmax => modest tolerance).
    out_f32 = jax.block_until_ready(
        transformer_block(x, params, num_heads=NUM_HEADS, compute_dtype=jnp.float32))
    assert out_f32.shape == (B, T, C)
    assert jnp.allclose(out_f32, ref, atol=1e-2, rtol=1e-2), "f32 kernel mismatch vs reference"

    # bf16 MXU path (v6e/v7x recommendation): bf16 operands, f32 accumulation.
    out_bf16 = jax.block_until_ready(
        transformer_block(x, params, num_heads=NUM_HEADS, compute_dtype=jnp.bfloat16))
    assert out_bf16.shape == (B, T, C)
    assert jnp.allclose(out_bf16, ref, atol=5e-2, rtol=5e-2), "bf16 kernel mismatch vs reference"

    print("KERNEL_OK")
</pallas_src>

<mosaic_0001>
module attributes {stable_mosaic.version = 11 : i64} {
  func.func @_transformer_block_kernel(%arg0: memref<16x32xf32, #tpu.memory_space<vmem>>, %arg1: memref<1x32xf32, #tpu.memory_space<vmem>>, %arg2: memref<1x32xf32, #tpu.memory_space<vmem>>, %arg3: memref<1x32xf32, #tpu.memory_space<vmem>>, %arg4: memref<1x32xf32, #tpu.memory_space<vmem>>, %arg5: memref<32x96xf32, #tpu.memory_space<vmem>>, %arg6: memref<32x32xf32, #tpu.memory_space<vmem>>, %arg7: memref<1x32xf32, #tpu.memory_space<vmem>>, %arg8: memref<32x128xf32, #tpu.memory_space<vmem>>, %arg9: memref<1x128xf32, #tpu.memory_space<vmem>>, %arg10: memref<128x32xf32, #tpu.memory_space<vmem>>, %arg11: memref<1x32xf32, #tpu.memory_space<vmem>>, %arg12: memref<2x256xf32, #tpu.memory_space<vmem>>) attributes {dimension_semantics = [], scalar_prefetch = 0 : i64, scratch_operands = 0 : i64, tpu.core_type = #tpu.core_type<tc>} {
    %c0 = arith.constant 0 : index
    %c0_0 = arith.constant 0 : index
    %0 = vector.load %arg0[%c0, %c0_0] : memref<16x32xf32, #tpu.memory_space<vmem>>, vector<16x32xf32>
    %c0_1 = arith.constant 0 : index
    %c0_2 = arith.constant 0 : index
    %1 = vector.load %arg1[%c0_1, %c0_2] : memref<1x32xf32, #tpu.memory_space<vmem>>, vector<1x32xf32>
    %2 = vector.shape_cast %1 : vector<1x32xf32> to vector<32xf32>
    %c0_3 = arith.constant 0 : index
    %c0_4 = arith.constant 0 : index
    %3 = vector.load %arg2[%c0_3, %c0_4] : memref<1x32xf32, #tpu.memory_space<vmem>>, vector<1x32xf32>
    %4 = vector.shape_cast %3 : vector<1x32xf32> to vector<32xf32>
    %cst = arith.constant dense<0.000000e+00> : vector<16xf32>
    %5 = vector.multi_reduction <add>, %0, %cst [1] : vector<16x32xf32> to vector<16xf32>
    %6 = vector.shape_cast %5 : vector<16xf32> to vector<16x1xf32>
    %cst_5 = arith.constant 3.200000e+01 : f32
    %7 = vector.broadcast %cst_5 : f32 to vector<16x1xf32>
    %8 = arith.divf %6, %7 : vector<16x1xf32>
    %9 = vector.broadcast %8 : vector<16x1xf32> to vector<16x32xf32>
    %10 = arith.subf %0, %9 : vector<16x32xf32>
    %11 = arith.mulf %10, %10 : vector<16x32xf32>
    %cst_6 = arith.constant dense<0.000000e+00> : vector<16xf32>
    %12 = vector.multi_reduction <add>, %11, %cst_6 [1] : vector<16x32xf32> to vector<16xf32>
    %13 = vector.shape_cast %12 : vector<16xf32> to vector<16x1xf32>
    %cst_7 = arith.constant 3.200000e+01 : f32
    %14 = vector.broadcast %cst_7 : f32 to vector<16x1xf32>
    %15 = arith.divf %13, %14 : vector<16x1xf32>
    %16 = vector.broadcast %8 : vector<16x1xf32> to vector<16x32xf32>
    %17 = arith.subf %0, %16 : vector<16x32xf32>
    %cst_8 = arith.constant 9.99999974E-6 : f32
    %18 = vector.broadcast %cst_8 : f32 to vector<16x1xf32>
    %19 = arith.addf %15, %18 : vector<16x1xf32>
    %20 = math.rsqrt %19 : vector<16x1xf32>
    %21 = vector.broadcast %20 : vector<16x1xf32> to vector<16x32xf32>
    %22 = arith.mulf %17, %21 : vector<16x32xf32>
    %23 = vector.shape_cast %2 : vector<32xf32> to vector<1x32xf32>
    %24 = vector.broadcast %23 : vector<1x32xf32> to vector<16x32xf32>
    %25 = arith.mulf %22, %24 : vector<16x32xf32>
    %26 = vector.shape_cast %4 : vector<32xf32> to vector<1x32xf32>
    %27 = vector.broadcast %26 : vector<1x32xf32> to vector<16x32xf32>
    %28 = arith.addf %25, %27 : vector<16x32xf32>
    %c0_9 = arith.constant 0 : index
    %c0_10 = arith.constant 0 : index
    %29 = vector.load %arg5[%c0_9, %c0_10] : memref<32x96xf32, #tpu.memory_space<vmem>>, vector<32x96xf32>
    %cst_11 = arith.constant dense<0.000000e+00> : vector<16x96xf32>
    %30 = tpu.matmul %28, %29, %cst_11 {dimension_numbers = #tpu.dot_dimension_numbers<[1], [0], [0], [1], [0, 0, 1, 1], [], []>} : vector<16x32xf32>, vector<32x96xf32>, vector<16x96xf32> -> vector<16x96xf32>
    %31 = vector.extract_strided_slice %30 {offsets = [0, 0], sizes = [16, 32], strides = [1, 1]} : vector<16x96xf32> to vector<16x32xf32>
    %32 = vector.extract_strided_slice %31 {offsets = [0, 0], sizes = [8, 8], strides = [1, 1]} : vector<16x32xf32> to vector<8x8xf32>
    %33 = vector.shape_cast %32 : vector<8x8xf32> to vector<1x8x8xf32>
    %34 = vector.extract_strided_slice %31 {offsets = [0, 8], sizes = [8, 8], strides = [1, 1]} : vector<16x32xf32> to vector<8x8xf32>
    %35 = vector.shape_cast %34 : vector<8x8xf32> to vector<1x8x8xf32>
    %36 = vector.extract_strided_slice %31 {offsets = [0, 16], sizes = [8, 8], strides = [1, 1]} : vector<16x32xf32> to vector<8x8xf32>
    %37 = vector.shape_cast %36 : vector<8x8xf32> to vector<1x8x8xf32>
    %38 = vector.extract_strided_slice %31 {offsets = [0, 24], sizes = [8, 8], strides = [1, 1]} : vector<16x32xf32> to vector<8x8xf32>
    %39 = vector.shape_cast %38 : vector<8x8xf32> to vector<1x8x8xf32>
    %40 = vector.extract_strided_slice %31 {offsets = [8, 0], sizes = [8, 8], strides = [1, 1]} : vector<16x32xf32> to vector<8x8xf32>
    %41 = vector.shape_cast %40 : vector<8x8xf32> to vector<1x8x8xf32>
    %42 = vector.extract_strided_slice %31 {offsets = [8, 8], sizes = [8, 8], strides = [1, 1]} : vector<16x32xf32> to vector<8x8xf32>
    %43 = vector.shape_cast %42 : vector<8x8xf32> to vector<1x8x8xf32>
    %44 = vector.extract_strided_slice %31 {offsets = [8, 16], sizes = [8, 8], strides = [1, 1]} : vector<16x32xf32> to vector<8x8xf32>
    %45 = vector.shape_cast %44 : vector<8x8xf32> to vector<1x8x8xf32>
    %46 = vector.extract_strided_slice %31 {offsets = [8, 24], sizes = [8, 8], strides = [1, 1]} : vector<16x32xf32> to vector<8x8xf32>
    %47 = vector.shape_cast %46 : vector<8x8xf32> to vector<1x8x8xf32>
    %48 = tpu.concatenate %33, %35, %37, %39, %41, %43, %45, %47 in 0 : vector<1x8x8xf32>, vector<1x8x8xf32>, vector<1x8x8xf32>, vector<1x8x8xf32>, vector<1x8x8xf32>, vector<1x8x8xf32>, vector<1x8x8xf32>, vector<1x8x8xf32> -> vector<8x8x8xf32>
    %49 = vector.extract_strided_slice %30 {offsets = [0, 32], sizes = [16, 32], strides = [1, 1]} : vector<16x96xf32> to vector<16x32xf32>
    %50 = vector.extract_strided_slice %49 {offsets = [0, 0], sizes = [8, 8], strides = [1, 1]} : vector<16x32xf32> to vector<8x8xf32>
    %51 = vector.shape_cast %50 : vector<8x8xf32> to vector<1x8x8xf32>
    %52 = vector.extract_strided_slice %49 {offsets = [0, 8], sizes = [8, 8], strides = [1, 1]} : vector<16x32xf32> to vector<8x8xf32>
    %53 = vector.shape_cast %52 : vector<8x8xf32> to vector<1x8x8xf32>
    %54 = vector.extract_strided_slice %49 {offsets = [0, 16], sizes = [8, 8], strides = [1, 1]} : vector<16x32xf32> to vector<8x8xf32>
    %55 = vector.shape_cast %54 : vector<8x8xf32> to vector<1x8x8xf32>
    %56 = vector.extract_strided_slice %49 {offsets = [0, 24], sizes = [8, 8], strides = [1, 1]} : vector<16x32xf32> to vector<8x8xf32>
    %57 = vector.shape_cast %56 : vector<8x8xf32> to vector<1x8x8xf32>
    %58 = vector.extract_strided_slice %49 {offsets = [8, 0], sizes = [8, 8], strides = [1, 1]} : vector<16x32xf32> to vector<8x8xf32>
    %59 = vector.shape_cast %58 : vector<8x8xf32> to vector<1x8x8xf32>
    %60 = vector.extract_strided_slice %49 {offsets = [8, 8], sizes = [8, 8], strides = [1, 1]} : vector<16x32xf32> to vector<8x8xf32>
    %61 = vector.shape_cast %60 : vector<8x8xf32> to vector<1x8x8xf32>
    %62 = vector.extract_strided_slice %49 {offsets = [8, 16], sizes = [8, 8], strides = [1, 1]} : vector<16x32xf32> to vector<8x8xf32>
    %63 = vector.shape_cast %62 : vector<8x8xf32> to vector<1x8x8xf32>
    %64 = vector.extract_strided_slice %49 {offsets = [8, 24], sizes = [8, 8], strides = [1, 1]} : vector<16x32xf32> to vector<8x8xf32>
    %65 = vector.shape_cast %64 : vector<8x8xf32> to vector<1x8x8xf32>
    %66 = tpu.concatenate %51, %53, %55, %57, %59, %61, %63, %65 in 0 : vector<1x8x8xf32>, vector<1x8x8xf32>, vector<1x8x8xf32>, vector<1x8x8xf32>, vector<1x8x8xf32>, vector<1x8x8xf32>, vector<1x8x8xf32>, vector<1x8x8xf32> -> vector<8x8x8xf32>
    %67 = vector.extract_strided_slice %30 {offsets = [0, 64], sizes = [16, 32], strides = [1, 1]} : vector<16x96xf32> to vector<16x32xf32>
    %68 = vector.extract_strided_slice %67 {offsets = [0, 0], sizes = [8, 8], strides = [1, 1]} : vector<16x32xf32> to vector<8x8xf32>
    %69 = vector.shape_cast %68 : vector<8x8xf32> to vector<1x8x8xf32>
    %70 = vector.extract_strided_slice %67 {offsets = [0, 8], sizes = [8, 8], strides = [1, 1]} : vector<16x32xf32> to vector<8x8xf32>
    %71 = vector.shape_cast %70 : vector<8x8xf32> to vector<1x8x8xf32>
    %72 = vector.extract_strided_slice %67 {offsets = [0, 16], sizes = [8, 8], strides = [1, 1]} : vector<16x32xf32> to vector<8x8xf32>
    %73 = vector.shape_cast %72 : vector<8x8xf32> to vector<1x8x8xf32>
    %74 = vector.extract_strided_slice %67 {offsets = [0, 24], sizes = [8, 8], strides = [1, 1]} : vector<16x32xf32> to vector<8x8xf32>
    %75 = vector.shape_cast %74 : vector<8x8xf32> to vector<1x8x8xf32>
    %76 = vector.extract_strided_slice %67 {offsets = [8, 0], sizes = [8, 8], strides = [1, 1]} : vector<16x32xf32> to vector<8x8xf32>
    %77 = vector.shape_cast %76 : vector<8x8xf32> to vector<1x8x8xf32>
    %78 = vector.extract_strided_slice %67 {offsets = [8, 8], sizes = [8, 8], strides = [1, 1]} : vector<16x32xf32> to vector<8x8xf32>
    %79 = vector.shape_cast %78 : vector<8x8xf32> to vector<1x8x8xf32>
    %80 = vector.extract_strided_slice %67 {offsets = [8, 16], sizes = [8, 8], strides = [1, 1]} : vector<16x32xf32> to vector<8x8xf32>
    %81 = vector.shape_cast %80 : vector<8x8xf32> to vector<1x8x8xf32>
    %82 = vector.extract_strided_slice %67 {offsets = [8, 24], sizes = [8, 8], strides = [1, 1]} : vector<16x32xf32> to vector<8x8xf32>
    %83 = vector.shape_cast %82 : vector<8x8xf32> to vector<1x8x8xf32>
    %84 = tpu.concatenate %69, %71, %73, %75, %77, %79, %81, %83 in 0 : vector<1x8x8xf32>, vector<1x8x8xf32>, vector<1x8x8xf32>, vector<1x8x8xf32>, vector<1x8x8xf32>, vector<1x8x8xf32>, vector<1x8x8xf32>, vector<1x8x8xf32> -> vector<8x8x8xf32>
    %85 = tpu.iota {dimensions = array<i32: 0>} : vector<8x8xi32>
    %86 = tpu.iota {dimensions = array<i32: 1>} : vector<8x8xi32>
    %87 = arith.cmpi sge, %85, %86 : vector<8x8xi32>
    %cst_12 = arith.constant 0.000000e+00 : f32
    %cst_13 = arith.constant -1.000000e+30 : f32
    %88 = vector.broadcast %cst_12 : f32 to vector<8x8xf32>
    %89 = vector.broadcast %cst_13 : f32 to vector<8x8xf32>
    %90 = arith.select %87, %88, %89 : vector<8x8xi1>, vector<8x8xf32>
    "tpu.trace_start"() <{level = 10 : i32, message = "bqd,bkd->bqk"}> : () -> ()
    %cst_14 = arith.constant dense<0.000000e+00> : vector<8x8x8xf32>
    %91 = tpu.matmul %48, %66, %cst_14 {dimension_numbers = #tpu.dot_dimension_numbers<[2], [2], [1], [1], [0, 0, 0, 1, 1, 1], [0], [0]>} : vector<8x8x8xf32>, vector<8x8x8xf32>, vector<8x8x8xf32> -> vector<8x8x8xf32>
    "tpu.trace_stop"() : () -> ()
    %cst_15 = arith.constant 0.176776692 : f32
    %92 = vector.broadcast %cst_15 : f32 to vector<8x8x8xf32>
    %93 = arith.mulf %91, %92 : vector<8x8x8xf32>
    %94 = vector.shape_cast %90 : vector<8x8xf32> to vector<1x8x8xf32>
    %95 = vector.broadcast %94 : vector<1x8x8xf32> to vector<8x8x8xf32>
    %96 = arith.addf %93, %95 : vector<8x8x8xf32>
    %cst_16 = arith.constant dense<0xFF800000> : vector<8x8xf32>
    %97 = vector.multi_reduction <maximumf>, %96, %cst_16 [2] : vector<8x8x8xf32> to vector<8x8xf32>
    %98 = vector.shape_cast %97 : vector<8x8xf32> to vector<8x8x1xf32>
    %99 = vector.broadcast %98 : vector<8x8x1xf32> to vector<8x8x8xf32>
    %100 = arith.subf %96, %99 : vector<8x8x8xf32>
    %101 = math.exp %100 : vector<8x8x8xf32>
    %cst_17 = arith.constant dense<0.000000e+00> : vector<8x8xf32>
    %102 = vector.multi_reduction <add>, %101, %cst_17 [2] : vector<8x8x8xf32> to vector<8x8xf32>
    %103 = vector.shape_cast %102 : vector<8x8xf32> to vector<8x8x1xf32>
    %104 = tpu.reciprocal %103 {approx = true} : vector<8x8x1xf32> -> vector<8x8x1xf32>
    %105 = vector.broadcast %104 : vector<8x8x1xf32> to vector<8x8x8xf32>
    %106 = arith.mulf %101, %105 : vector<8x8x8xf32>
    "tpu.trace_start"() <{level = 10 : i32, message = "bqk,bkd->bqd"}> : () -> ()
    %cst_18 = arith.constant dense<0.000000e+00> : vector<8x8x8xf32>
    %107 = tpu.matmul %106, %84, %cst_18 {dimension_numbers = #tpu.dot_dimension_numbers<[2], [1], [1], [2], [0, 0, 0, 1, 1, 2], [0], [0]>} : vector<8x8x8xf32>, vector<8x8x8xf32>, vector<8x8x8xf32> -> vector<8x8x8xf32>
    "tpu.trace_stop"() : () -> ()
    %c0_19 = arith.constant 0 : index
    %c0_20 = arith.constant 0 : index
    %108 = vector.load %arg6[%c0_19, %c0_20] : memref<32x32xf32, #tpu.memory_space<vmem>>, vector<32x32xf32>
    %cst_21 = arith.constant 0.000000e+00 : f32
    %109 = vector.broadcast %cst_21 : f32 to vector<16x32xf32>
    %110 = vector.extract_strided_slice %107 {offsets = [0, 0, 0], sizes = [1, 8, 8], strides = [1, 1, 1]} : vector<8x8x8xf32> to vector<1x8x8xf32>
    %111 = vector.shape_cast %110 : vector<1x8x8xf32> to vector<8x8xf32>
    %112 = vector.extract_strided_slice %107 {offsets = [4, 0, 0], sizes = [1, 8, 8], strides = [1, 1, 1]} : vector<8x8x8xf32> to vector<1x8x8xf32>
    %113 = vector.shape_cast %112 : vector<1x8x8xf32> to vector<8x8xf32>
    %114 = tpu.concatenate %111, %113 in 0 : vector<8x8xf32>, vector<8x8xf32> -> vector<16x8xf32>
    %115 = vector.extract_strided_slice %108 {offsets = [0, 0], sizes = [8, 32], strides = [1, 1]} : vector<32x32xf32> to vector<8x32xf32>
    %cst_22 = arith.constant dense<0.000000e+00> : vector<16x32xf32>
    %116 = tpu.matmul %114, %115, %cst_22 {dimension_numbers = #tpu.dot_dimension_numbers<[1], [0], [0], [1], [0, 0, 1, 1], [], []>} : vector<16x8xf32>, vector<8x32xf32>, vector<16x32xf32> -> vector<16x32xf32>
    %117 = arith.addf %109, %116 : vector<16x32xf32>
    %118 = vector.extract_strided_slice %107 {offsets = [1, 0, 0], sizes = [1, 8, 8], strides = [1, 1, 1]} : vector<8x8x8xf32> to vector<1x8x8xf32>
    %119 = vector.shape_cast %118 : vector<1x8x8xf32> to vector<8x8xf32>
    %120 = vector.extract_strided_slice %107 {offsets = [5, 0, 0], sizes = [1, 8, 8], strides = [1, 1, 1]} : vector<8x8x8xf32> to vector<1x8x8xf32>
    %121 = vector.shape_cast %120 : vector<1x8x8xf32> to vector<8x8xf32>
    %122 = tpu.concatenate %119, %121 in 0 : vector<8x8xf32>, vector<8x8xf32> -> vector<16x8xf32>
    %123 = vector.extract_strided_slice %108 {offsets = [8, 0], sizes = [8, 32], strides = [1, 1]} : vector<32x32xf32> to vector<8x32xf32>
    %cst_23 = arith.constant dense<0.000000e+00> : vector<16x32xf32>
    %124 = tpu.matmul %122, %123, %cst_23 {dimension_numbers = #tpu.dot_dimension_numbers<[1], [0], [0], [1], [0, 0, 1, 1], [], []>} : vector<16x8xf32>, vector<8x32xf32>, vector<16x32xf32> -> vector<16x32xf32>
    %125 = arith.addf %117, %124 : vector<16x32xf32>
    %126 = vector.extract_strided_slice %107 {offsets = [2, 0, 0], sizes = [1, 8, 8], strides = [1, 1, 1]} : vector<8x8x8xf32> to vector<1x8x8xf32>
    %127 = vector.shape_cast %126 : vector<1x8x8xf32> to vector<8x8xf32>
    %128 = vector.extract_strided_slice %107 {offsets = [6, 0, 0], sizes = [1, 8, 8], strides = [1, 1, 1]} : vector<8x8x8xf32> to vector<1x8x8xf32>
    %129 = vector.shape_cast %128 : vector<1x8x8xf32> to vector<8x8xf32>
    %130 = tpu.concatenate %127, %129 in 0 : vector<8x8xf32>, vector<8x8xf32> -> vector<16x8xf32>
    %131 = vector.extract_strided_slice %108 {offsets = [16, 0], sizes = [8, 32], strides = [1, 1]} : vector<32x32xf32> to vector<8x32xf32>
    %cst_24 = arith.constant dense<0.000000e+00> : vector<16x32xf32>
    %132 = tpu.matmul %130, %131, %cst_24 {dimension_numbers = #tpu.dot_dimension_numbers<[1], [0], [0], [1], [0, 0, 1, 1], [], []>} : vector<16x8xf32>, vector<8x32xf32>, vector<16x32xf32> -> vector<16x32xf32>
    %133 = arith.addf %125, %132 : vector<16x32xf32>
    %134 = vector.extract_strided_slice %107 {offsets = [3, 0, 0], sizes = [1, 8, 8], strides = [1, 1, 1]} : vector<8x8x8xf32> to vector<1x8x8xf32>
    %135 = vector.shape_cast %134 : vector<1x8x8xf32> to vector<8x8xf32>
    %136 = vector.extract_strided_slice %107 {offsets = [7, 0, 0], sizes = [1, 8, 8], strides = [1, 1, 1]} : vector<8x8x8xf32> to vector<1x8x8xf32>
    %137 = vector.shape_cast %136 : vector<1x8x8xf32> to vector<8x8xf32>
    %138 = tpu.concatenate %135, %137 in 0 : vector<8x8xf32>, vector<8x8xf32> -> vector<16x8xf32>
    %139 = vector.extract_strided_slice %108 {offsets = [24, 0], sizes = [8, 32], strides = [1, 1]} : vector<32x32xf32> to vector<8x32xf32>
    %cst_25 = arith.constant dense<0.000000e+00> : vector<16x32xf32>
    %140 = tpu.matmul %138, %139, %cst_25 {dimension_numbers = #tpu.dot_dimension_numbers<[1], [0], [0], [1], [0, 0, 1, 1], [], []>} : vector<16x8xf32>, vector<8x32xf32>, vector<16x32xf32> -> vector<16x32xf32>
    %141 = arith.addf %133, %140 : vector<16x32xf32>
    %c0_26 = arith.constant 0 : index
    %c0_27 = arith.constant 0 : index
    %142 = vector.load %arg7[%c0_26, %c0_27] : memref<1x32xf32, #tpu.memory_space<vmem>>, vector<1x32xf32>
    %143 = vector.shape_cast %142 : vector<1x32xf32> to vector<32xf32>
    %144 = vector.shape_cast %143 : vector<32xf32> to vector<1x32xf32>
    %145 = vector.broadcast %144 : vector<1x32xf32> to vector<16x32xf32>
    %146 = arith.addf %141, %145 : vector<16x32xf32>
    %147 = arith.addf %0, %146 : vector<16x32xf32>
    %c0_28 = arith.constant 0 : index
    %c0_29 = arith.constant 0 : index
    %148 = vector.load %arg3[%c0_28, %c0_29] : memref<1x32xf32, #tpu.memory_space<vmem>>, vector<1x32xf32>
    %149 = vector.shape_cast %148 : vector<1x32xf32> to vector<32xf32>
    %c0_30 = arith.constant 0 : index
    %c0_31 = arith.constant 0 : index
    %150 = vector.load %arg4[%c0_30, %c0_31] : memref<1x32xf32, #tpu.memory_space<vmem>>, vector<1x32xf32>
    %151 = vector.shape_cast %150 : vector<1x32xf32> to vector<32xf32>
    %cst_32 = arith.constant dense<0.000000e+00> : vector<16xf32>
    %152 = vector.multi_reduction <add>, %147, %cst_32 [1] : vector<16x32xf32> to vector<16xf32>
    %153 = vector.shape_cast %152 : vector<16xf32> to vector<16x1xf32>
    %cst_33 = arith.constant 3.200000e+01 : f32
    %154 = vector.broadcast %cst_33 : f32 to vector<16x1xf32>
    %155 = arith.divf %153, %154 : vector<16x1xf32>
    %156 = vector.broadcast %155 : vector<16x1xf32> to vector<16x32xf32>
    %157 = arith.subf %147, %156 : vector<16x32xf32>
    %158 = arith.mulf %157, %157 : vector<16x32xf32>
    %cst_34 = arith.constant dense<0.000000e+00> : vector<16xf32>
    %159 = vector.multi_reduction <add>, %158, %cst_34 [1] : vector<16x32xf32> to vector<16xf32>
    %160 = vector.shape_cast %159 : vector<16xf32> to vector<16x1xf32>
    %cst_35 = arith.constant 3.200000e+01 : f32
    %161 = vector.broadcast %cst_35 : f32 to vector<16x1xf32>
    %162 = arith.divf %160, %161 : vector<16x1xf32>
    %163 = vector.broadcast %155 : vector<16x1xf32> to vector<16x32xf32>
    %164 = arith.subf %147, %163 : vector<16x32xf32>
    %cst_36 = arith.constant 9.99999974E-6 : f32
    %165 = vector.broadcast %cst_36 : f32 to vector<16x1xf32>
    %166 = arith.addf %162, %165 : vector<16x1xf32>
    %167 = math.rsqrt %166 : vector<16x1xf32>
    %168 = vector.broadcast %167 : vector<16x1xf32> to vector<16x32xf32>
    %169 = arith.mulf %164, %168 : vector<16x32xf32>
    %170 = vector.shape_cast %149 : vector<32xf32> to vector<1x32xf32>
    %171 = vector.broadcast %170 : vector<1x32xf32> to vector<16x32xf32>
    %172 = arith.mulf %169, %171 : vector<16x32xf32>
    %173 = vector.shape_cast %151 : vector<32xf32> to vector<1x32xf32>
    %174 = vector.broadcast %173 : vector<1x32xf32> to vector<16x32xf32>
    %175 = arith.addf %172, %174 : vector<16x32xf32>
    %c0_37 = arith.constant 0 : index
    %c0_38 = arith.constant 0 : index
    %176 = vector.load %arg8[%c0_37, %c0_38] : memref<32x128xf32, #tpu.memory_space<vmem>>, vector<32x128xf32>
    %cst_39 = arith.constant dense<0.000000e+00> : vector<16x128xf32>
    %177 = tpu.matmul %175, %176, %cst_39 {dimension_numbers = #tpu.dot_dimension_numbers<[1], [0], [0], [1], [0, 0, 1, 1], [], []>} : vector<16x32xf32>, vector<32x128xf32>, vector<16x128xf32> -> vector<16x128xf32>
    %c0_40 = arith.constant 0 : index
    %c0_41 = arith.constant 0 : index
    %178 = vector.load %arg9[%c0_40, %c0_41] : memref<1x128xf32, #tpu.memory_space<vmem>>, vector<1x128xf32>
    %179 = vector.shape_cast %178 : vector<1x128xf32> to vector<128xf32>
    %180 = vector.shape_cast %179 : vector<128xf32> to vector<1x128xf32>
    %181 = vector.broadcast %180 : vector<1x128xf32> to vector<16x128xf32>
    %182 = arith.addf %177, %181 : vector<16x128xf32>
    %cst_42 = arith.constant 0.000000e+00 : f32
    %183 = vector.broadcast %cst_42 : f32 to vector<16x128xf32>
    %184 = arith.maximumf %182, %183 : vector<16x128xf32>
    %c0_43 = arith.constant 0 : index
    %c0_44 = arith.constant 0 : index
    %185 = vector.load %arg10[%c0_43, %c0_44] : memref<128x32xf32, #tpu.memory_space<vmem>>, vector<128x32xf32>
    %cst_45 = arith.constant dense<0.000000e+00> : vector<16x32xf32>
    %186 = tpu.matmul %184, %185, %cst_45 {dimension_numbers = #tpu.dot_dimension_numbers<[1], [0], [0], [1], [0, 0, 1, 1], [], []>} : vector<16x128xf32>, vector<128x32xf32>, vector<16x32xf32> -> vector<16x32xf32>
    %c0_46 = arith.constant 0 : index
    %c0_47 = arith.constant 0 : index
    %187 = vector.load %arg11[%c0_46, %c0_47] : memref<1x32xf32, #tpu.memory_space<vmem>>, vector<1x32xf32>
    %188 = vector.shape_cast %187 : vector<1x32xf32> to vector<32xf32>
    %189 = vector.shape_cast %188 : vector<32xf32> to vector<1x32xf32>
    %190 = vector.broadcast %189 : vector<1x32xf32> to vector<16x32xf32>
    %191 = arith.addf %186, %190 : vector<16x32xf32>
    %192 = arith.addf %147, %191 : vector<16x32xf32>
    %193 = vector.extract_strided_slice %192 {offsets = [0, 0], sizes = [1, 32], strides = [1, 1]} : vector<16x32xf32> to vector<1x32xf32>
    %194 = vector.extract_strided_slice %192 {offsets = [1, 0], sizes = [1, 32], strides = [1, 1]} : vector<16x32xf32> to vector<1x32xf32>
    %195 = vector.extract_strided_slice %192 {offsets = [2, 0], sizes = [1, 32], strides = [1, 1]} : vector<16x32xf32> to vector<1x32xf32>
    %196 = vector.extract_strided_slice %192 {offsets = [3, 0], sizes = [1, 32], strides = [1, 1]} : vector<16x32xf32> to vector<1x32xf32>
    %197 = vector.extract_strided_slice %192 {offsets = [4, 0], sizes = [1, 32], strides = [1, 1]} : vector<16x32xf32> to vector<1x32xf32>
    %198 = vector.extract_strided_slice %192 {offsets = [5, 0], sizes = [1, 32], strides = [1, 1]} : vector<16x32xf32> to vector<1x32xf32>
    %199 = vector.extract_strided_slice %192 {offsets = [6, 0], sizes = [1, 32], strides = [1, 1]} : vector<16x32xf32> to vector<1x32xf32>
    %200 = vector.extract_strided_slice %192 {offsets = [7, 0], sizes = [1, 32], strides = [1, 1]} : vector<16x32xf32> to vector<1x32xf32>
    %201 = tpu.concatenate %193, %194, %195, %196, %197, %198, %199, %200 in 1 : vector<1x32xf32>, vector<1x32xf32>, vector<1x32xf32>, vector<1x32xf32>, vector<1x32xf32>, vector<1x32xf32>, vector<1x32xf32>, vector<1x32xf32> -> vector<1x256xf32>
    %202 = vector.extract_strided_slice %192 {offsets = [8, 0], sizes = [1, 32], strides = [1, 1]} : vector<16x32xf32> to vector<1x32xf32>
    %203 = vector.extract_strided_slice %192 {offsets = [9, 0], sizes = [1, 32], strides = [1, 1]} : vector<16x32xf32> to vector<1x32xf32>
    %204 = vector.extract_strided_slice %192 {offsets = [10, 0], sizes = [1, 32], strides = [1, 1]} : vector<16x32xf32> to vector<1x32xf32>
    %205 = vector.extract_strided_slice %192 {offsets = [11, 0], sizes = [1, 32], strides = [1, 1]} : vector<16x32xf32> to vector<1x32xf32>
    %206 = vector.extract_strided_slice %192 {offsets = [12, 0], sizes = [1, 32], strides = [1, 1]} : vector<16x32xf32> to vector<1x32xf32>
    %207 = vector.extract_strided_slice %192 {offsets = [13, 0], sizes = [1, 32], strides = [1, 1]} : vector<16x32xf32> to vector<1x32xf32>
    %208 = vector.extract_strided_slice %192 {offsets = [14, 0], sizes = [1, 32], strides = [1, 1]} : vector<16x32xf32> to vector<1x32xf32>
    %209 = vector.extract_strided_slice %192 {offsets = [15, 0], sizes = [1, 32], strides = [1, 1]} : vector<16x32xf32> to vector<1x32xf32>
    %210 = tpu.concatenate %202, %203, %204, %205, %206, %207, %208, %209 in 1 : vector<1x32xf32>, vector<1x32xf32>, vector<1x32xf32>, vector<1x32xf32>, vector<1x32xf32>, vector<1x32xf32>, vector<1x32xf32>, vector<1x32xf32> -> vector<1x256xf32>
    %211 = tpu.concatenate %201, %210 in 0 : vector<1x256xf32>, vector<1x256xf32> -> vector<2x256xf32>
    %c0_48 = arith.constant 0 : index
    %c0_49 = arith.constant 0 : index
    %212 = vector.load %arg12[%c0_48, %c0_49] : memref<2x256xf32, #tpu.memory_space<vmem>>, vector<2x256xf32>
    tpu.vector_store %arg12[%c0_48, %c0_49], %211 {strides = array<i32>} : memref<2x256xf32, #tpu.memory_space<vmem>>, vector<2x256xf32>,
    return
  }
}

</mosaic_0001>

<llo_original>
// kernel: tpu_custom_call.1
$region0: #{tpu_custom_call.1}
  #allocation0 [shape = 'u32[]', space=smem, size = 0x4, offset = 0x4, fixed_abs, tag = 'smem constant byte address 0x4 - core index']
  #allocation1 [shape = 'u32[144,128]{1,0:T(1,128)}', space=vmem, size = 0x12000, scoped, tag = 'internal scratch']
  %s0 = inlined_call_operand.vmem [shape: f32[16,32], index: 0, kind: input, shape index: {}]
  %s1 = inlined_call_operand.vmem [shape: f32[1,32], index: 1, kind: input, shape index: {}]
  %s2 = inlined_call_operand.vmem [shape: f32[1,32], index: 2, kind: input, shape index: {}]
  %s3 = inlined_call_operand.vmem [shape: f32[1,32], index: 3, kind: input, shape index: {}]
  %s4 = inlined_call_operand.vmem [shape: f32[1,32], index: 4, kind: input, shape index: {}]
  %s5 = inlined_call_operand.vmem [shape: f32[32,96], index: 5, kind: input, shape index: {}]
  %s6 = inlined_call_operand.vmem [shape: f32[32,32], index: 6, kind: input, shape index: {}]
  %s7 = inlined_call_operand.vmem [shape: f32[1,32], index: 7, kind: input, shape index: {}]
  %s8 = inlined_call_operand.vmem [shape: f32[32,128], index: 8, kind: input, shape index: {}]
  %s9 = inlined_call_operand.vmem [shape: f32[1,128], index: 9, kind: input, shape index: {}]
  %s10 = inlined_call_operand.vmem [shape: f32[128,32], index: 10, kind: input, shape index: {}]
  %s11 = inlined_call_operand.vmem [shape: f32[1,32], index: 11, kind: input, shape index: {}]
  %s12 = inlined_call_operand.hbm [shape: f32[2,256], index: 12, kind: output, shape index: {}]
  %s13 = sld [smem:[#allocation0]]
  $region58: #{tpu_custom_call.1} parent=0
    _
  %s15 = ssub.s32 1, %s13
  %s16 = scalar_select 0, %s15, %s13
  $region1: #{tpu_custom_call.1} parent=0
    #allocation2 [shape = 'u8[2048]{0}', space=vmem, size = 0x800, scoped, tag = 'output window, operand 0, single buffered']
    #allocation3 [shape = 's32[1]{0}', space=sflag, size = 0x4, scoped, tag = 'scoped memory for tpu_custom_call.1']
    %17 = vsyncpa [#allocation3], 0
    // Predicated region
    $region2: #{tpu_custom_call.1} parent=1 // pred_check
      _
    $region3: #{tpu_custom_call.1} parent=1 // pred_check_branch
      %19 = sbr.rel (0) target = $region5
    $region4: #{tpu_custom_call.1} parent=1 // pred_region
      _
    $region5: #{tpu_custom_call.1} parent=1 // pred_fallthru
      _
    // Predicated region
    $region6: #{tpu_custom_call.1} parent=1 // pred_check
      _
    $region7: #{tpu_custom_call.1} parent=1 // pred_check_branch
      %21 = sbr.rel (0) target = $region9
    $region8: #{tpu_custom_call.1} parent=1 // pred_region
      _
    $region9: #{tpu_custom_call.1} parent=1 // pred_fallthru
      _
    // Predicated region
    $region10: #{tpu_custom_call.1} parent=1 // pred_check
      _
    $region11: #{tpu_custom_call.1} parent=1 // pred_check_branch
      %23 = sbr.rel (0) target = $region13
    $region12: #{tpu_custom_call.1} parent=1 // pred_region
      _
    $region13: #{tpu_custom_call.1} parent=1 // pred_fallthru
      _
    // Predicated region
    $region14: #{tpu_custom_call.1} parent=1 // pred_check
      _
    $region15: #{tpu_custom_call.1} parent=1 // pred_check_branch
      %25 = sbr.rel (0) target = $region17
    $region16: #{tpu_custom_call.1} parent=1 // pred_region
      _
    $region17: #{tpu_custom_call.1} parent=1 // pred_fallthru
      _
    // Predicated region
    $region18: #{tpu_custom_call.1} parent=1 // pred_check
      _
    $region19: #{tpu_custom_call.1} parent=1 // pred_check_branch
      %27 = sbr.rel (0) target = $region21
    $region20: #{tpu_custom_call.1} parent=1 // pred_region
      _
    $region21: #{tpu_custom_call.1} parent=1 // pred_fallthru
      _
    // Predicated region
    $region22: #{tpu_custom_call.1} parent=1 // pred_check
      _
    $region23: #{tpu_custom_call.1} parent=1 // pred_check_branch
      %29 = sbr.rel (0) target = $region25
    $region24: #{tpu_custom_call.1} parent=1 // pred_region
      _
    $region25: #{tpu_custom_call.1} parent=1 // pred_fallthru
      _
    // Predicated region
    $region26: #{tpu_custom_call.1} parent=1 // pred_check
      _
    $region27: #{tpu_custom_call.1} parent=1 // pred_check_branch
      %31 = sbr.rel (0) target = $region29
    $region28: #{tpu_custom_call.1} parent=1 // pred_region
      _
    $region29: #{tpu_custom_call.1} parent=1 // pred_fallthru
      _
    // Predicated region
    $region30: #{tpu_custom_call.1} parent=1 // pred_check
      _
    $region31: #{tpu_custom_call.1} parent=1 // pred_check_branch
      %33 = sbr.rel (0) target = $region33
    $region32: #{tpu_custom_call.1} parent=1 // pred_region
      _
    $region33: #{tpu_custom_call.1} parent=1 // pred_fallthru
      _
    // Predicated region
    $region34: #{tpu_custom_call.1} parent=1 // pred_check
      _
    $region35: #{tpu_custom_call.1} parent=1 // pred_check_branch
      %35 = sbr.rel (0) target = $region37
    $region36: #{tpu_custom_call.1} parent=1 // pred_region
      _
    $region37: #{tpu_custom_call.1} parent=1 // pred_fallthru
      _
    // Predicated region
    $region38: #{tpu_custom_call.1} parent=1 // pred_check
      _
    $region39: #{tpu_custom_call.1} parent=1 // pred_check_branch
      %37 = sbr.rel (0) target = $region41
    $region40: #{tpu_custom_call.1} parent=1 // pred_region
      _
    $region41: #{tpu_custom_call.1} parent=1 // pred_fallthru
      _
    // Predicated region
    $region42: #{tpu_custom_call.1} parent=1 // pred_check
      _
    $region43: #{tpu_custom_call.1} parent=1 // pred_check_branch
      %39 = sbr.rel (0) target = $region45
    $region44: #{tpu_custom_call.1} parent=1 // pred_region
      _
    $region45: #{tpu_custom_call.1} parent=1 // pred_fallthru
      _
    // Predicated region
    $region46: #{tpu_custom_call.1} parent=1 // pred_check
      _
    $region47: #{tpu_custom_call.1} parent=1 // pred_check_branch
      %41 = sbr.rel (0) target = $region49
    $region48: #{tpu_custom_call.1} parent=1 // pred_region
      _
    $region49: #{tpu_custom_call.1} parent=1 // pred_fallthru
      _
    %v42 = vld [vmem:[%s0] sm:$0xff]
    %v43 = vld [vmem:[%s0 + $0x8] sm:$0xff]
    %v44 = vld [vmem:[%s1] sm:$0x1]
    %v45 = vld [vmem:[%s2] sm:$0x1]
    %vm46 = vcmask 261120
    %v47 = vsel %vm46, %v42, 0.0
    %48 = vadd.xlane.f32.xlu0 %v47
    %v49 = vpop.xlane.xlu0 %48
    %v50 = vsel %vm46, %v43, 0.0
    %51 = vadd.xlane.f32.xlu0 %v50
    %v52 = vpop.xlane.xlu0 %51
    %v53 = vrcp.pop 32.0
    %v54 = vmul.f32 %v49, %v53
    %v55 = vmul.f32 %v52, %v53
    %v56 = vsub.f32 %v42, %v54
    %v57 = vsub.f32 %v43, %v55
    %v58 = vmul.f32 %v56, %v56
    %v59 = vmul.f32 %v57, %v57
    %v60 = vsel %vm46, %v58, 0.0
    %61 = vadd.xlane.f32.xlu0 %v60
    %v62 = vpop.xlane.xlu0 %61
    %v63 = vsel %vm46, %v59, 0.0
    %64 = vadd.xlane.f32.xlu0 %v63
    %v65 = vpop.xlane.xlu0 %64
    %v66 = vmul.f32 %v62, %v53
    %v67 = vmul.f32 %v65, %v53
    %v68 = vadd.f32 %v66, 1e-05
    %v69 = vadd.f32 %v67, 1e-05
    %v70 = vrsqrt.pop %v68
    %v71 = vrsqrt.pop %v69
    %v72 = vmul.f32 %v56, %v70
    %v73 = vmul.f32 %v57, %v71
    %v75 = vlaneseq
    %v76 = vshrl.u32 %v75, 7
    %v77 = vsub.s32 0, %v76
    %v78 = vrot.slane %v44, %v77
    %v80 = vmul.f32 %v72, %v78
    %v81 = vmul.f32 %v73, %v78
    %v83 = vlaneseq
    %v84 = vshrl.u32 %v83, 7
    %v85 = vsub.s32 0, %v84
    %v86 = vrot.slane %v45, %v85
    %v88 = vadd.f32 %v80, %v86
    %v89 = vadd.f32 %v81, %v86
    %v90 = vld [vmem:[%s5] sm:$0xff]
    %v91 = vld [vmem:[%s5 + $0x8] sm:$0xff]
    %v92 = vld [vmem:[%s5 + $0x10] sm:$0xff]
    %v93 = vld [vmem:[%s5 + $0x18] sm:$0xff]
    %v95 = vsel %vm46, %v88, 0
    %v98 = vsel %vm46, %v89, 0
    %100 = vmatprep.subr.mxu0 0.0
    %101 = vmatpush1.msra.mxu0 0.0
    %102 = vmatprep.subr.mxu0 0.0
    %103 = vmatpush1.msra.mxu0 0.0
    %104 = vmatprep.subr.mxu0 0.0
    %105 = vmatpush1.msra.mxu0 0.0
    %106 = vmatprep.subr.mxu0 0.0
    %107 = vmatpush1.msra.mxu0 0.0
    %108 = vmatprep.subr.mxu0 0.0
    %109 = vmatpush1.msra.mxu0 0.0
    %110 = vmatprep.subr.mxu0 0.0
    %111 = vmatpush1.msra.mxu0 0.0
    %112 = vmatprep.subr.mxu0 0.0
    %113 = vmatpush1.msra.mxu0 0.0
    %114 = vmatprep.subr.mxu0 0.0
    %115 = vmatpush1.msra.mxu0 0.0
    %116 = vmatprep.subr.mxu0 0.0
    %117 = vmatpush1.msra.mxu0 0.0
    %118 = vmatprep.subr.mxu0 0.0
    %119 = vmatpush1.msra.mxu0 0.0
    %120 = vmatprep.subr.mxu0 0.0
    %121 = vmatpush1.msra.mxu0 0.0
    %122 = vmatprep.subr.mxu0 0.0
    %123 = vmatpush1.msra.mxu0 0.0
    %124 = vmatprep.subr.mxu0 0.0
    %125 = vmatpush1.msra.mxu0 %v93
    %126 = vmatprep.subr.mxu0 0.0
    %127 = vmatpush1.msra.mxu0 %v92
    %128 = vmatprep.subr.mxu0 0.0
    %129 = vmatpush1.msra.mxu0 %v91
    %130 = vmatprep.subr.mxu0 0.0
    %131 = vmatpush1.msra.mxu0 %v90
    %132 = vmatprep.subr.mxu0 0.0
    %133 = vmatpush2.msra.mxu0 0.0
    %134 = vmatprep.subr.mxu0 0.0
    %135 = vmatpush2.msra.mxu0 0.0
    %136 = vmatprep.subr.mxu0 0.0
    %137 = vmatpush2.msra.mxu0 0.0
    %138 = vmatprep.subr.mxu0 0.0
    %139 = vmatpush2.msra.mxu0 0.0
    %140 = vmatprep.subr.mxu0 0.0
    %141 = vmatpush2.msra.mxu0 0.0
    %142 = vmatprep.subr.mxu0 0.0
    %143 = vmatpush2.msra.mxu0 0.0
    %144 = vmatprep.subr.mxu0 0.0
    %145 = vmatpush2.msra.mxu0 0.0
    %146 = vmatprep.subr.mxu0 0.0
    %147 = vmatpush2.msra.mxu0 0.0
    %148 = vmatprep.subr.mxu0 0.0
    %149 = vmatpush2.msra.mxu0 0.0
    %150 = vmatprep.subr.mxu0 0.0
    %151 = vmatpush2.msra.mxu0 0.0
    %152 = vmatprep.subr.mxu0 0.0
    %153 = vmatpush2.msra.mxu0 0.0
    %154 = vmatprep.subr.mxu0 0.0
    %155 = vmatpush2.msra.mxu0 0.0
    %156 = vmatprep.subr.mxu0 0.0
    %157 = vmatpush2.msra.mxu0 0.0
    %158 = vmatprep.subr.mxu0 0.0
    %159 = vmatpush2.msra.mxu0 0.0
    %160 = vmatprep.subr.mxu0 0.0
    %161 = vmatpush2.msra.mxu0 0.0
    %162 = vmatprep.subr.mxu0 0.0
    %163 = vmatpush2.msra.mxu0 0.0
    %164 = vmatprep.mubr.f32.mxu0 0.0
    %165 = vmatmul.mubr.f32.gmra.mxu0 %v95
    %v166 = vpop.f32.mrf.mxu0
    %v167 = vadd.f32 0.0, %v166
    %v168 = vpop.f32.mrf.mxu0
    %169 = vmatprep.mubr.f32.mxu0 0.0
    %170 = vmatmul.mubr.f32.gmra.mxu0 %v98
    %v171 = vpop.f32.mrf.mxu0
    %v172 = vadd.f32 0.0, %v171
    %v173 = vpop.f32.mrf.mxu0
    %174 = vdwg.mxu0
    %176 = vrot.lane.b32.xlu0 %v167, 120
    %v177 = vpop.permute.xlu0 %176
    %178 = vrot.lane.b32.xlu0 %v167, 112
    %v179 = vpop.permute.xlu0 %178
    %180 = vrot.lane.b32.xlu0 %v167, 104
    %v181 = vpop.permute.xlu0 %180
    %183 = vrot.lane.b32.xlu0 %v172, 120
    %v184 = vpop.permute.xlu0 %183
    %185 = vrot.lane.b32.xlu0 %v172, 112
    %v186 = vpop.permute.xlu0 %185
    %187 = vrot.lane.b32.xlu0 %v172, 104
    %v188 = vpop.permute.xlu0 %187
    %v189 = vlaneseq
    %v190 = vshrl.u32 %v189, 7
    %v191 = vlaneseq
    %v192 = vand.u32 %v191, 127
    %vm193 = vcmp.ge.s32.totalorder %v190, %v192
    %v194 = vsel %vm193, 0.0, -1e+30
    %195 = vrot.lane.b32.xlu0 %v167, 96
    %v196 = vpop.permute.xlu0 %195
    %vm197 = vcmask 64512
    %v198 = vsel %vm197, %v167, 0
    %v200 = vsel %vm197, %v196, 0
    %202 = vmatprep.subr.mxu0 0.0
    %203 = vmatpush1.xpose.msra.mxu0 0.0
    %204 = vmatprep.subr.mxu0 0.0
    %205 = vmatpush1.xpose.msra.mxu0 0.0
    %206 = vmatprep.subr.mxu0 0.0
    %207 = vmatpush1.xpose.msra.mxu0 0.0
    %208 = vmatprep.subr.mxu0 0.0
    %209 = vmatpush1.xpose.msra.mxu0 0.0
    %210 = vmatprep.subr.mxu0 0.0
    %211 = vmatpush1.xpose.msra.mxu0 0.0
    %212 = vmatprep.subr.mxu0 0.0
    %213 = vmatpush1.xpose.msra.mxu0 0.0
    %214 = vmatprep.subr.mxu0 0.0
    %215 = vmatpush1.xpose.msra.mxu0 0.0
    %216 = vmatprep.subr.mxu0 0.0
    %217 = vmatpush1.xpose.msra.mxu0 0.0
    %218 = vmatprep.subr.mxu0 0.0
    %219 = vmatpush1.xpose.msra.mxu0 0.0
    %220 = vmatprep.subr.mxu0 0.0
    %221 = vmatpush1.xpose.msra.mxu0 0.0
    %222 = vmatprep.subr.mxu0 0.0
    %223 = vmatpush1.xpose.msra.mxu0 0.0
    %224 = vmatprep.subr.mxu0 0.0
    %225 = vmatpush1.xpose.msra.mxu0 0.0
    %226 = vmatprep.subr.mxu0 0.0
    %227 = vmatpush1.xpose.msra.mxu0 0.0
    %228 = vmatprep.subr.mxu0 0.0
    %229 = vmatpush1.xpose.msra.mxu0 0.0
    %230 = vmatprep.subr.mxu0 0.0
    %231 = vmatpush1.xpose.msra.mxu0 0.0
    %232 = vmatprep.subr.mxu0 0.0
    %233 = vmatpush1.xpose.msra.mxu0 %v200
    %234 = vmatprep.subr.mxu0 0.0
    %235 = vmatpush2.xpose.msra.mxu0 0.0
    %236 = vmatprep.subr.mxu0 0.0
    %237 = vmatpush2.xpose.msra.mxu0 0.0
    %238 = vmatprep.subr.mxu0 0.0
    %239 = vmatpush2.xpose.msra.mxu0 0.0
    %240 = vmatprep.subr.mxu0 0.0
    %241 = vmatpush2.xpose.msra.mxu0 0.0
    %242 = vmatprep.subr.mxu0 0.0
    %243 = vmatpush2.xpose.msra.mxu0 0.0
    %244 = vmatprep.subr.mxu0 0.0
    %245 = vmatpush2.xpose.msra.mxu0 0.0
    %246 = vmatprep.subr.mxu0 0.0
    %247 = vmatpush2.xpose.msra.mxu0 0.0
    %248 = vmatprep.subr.mxu0 0.0
    %249 = vmatpush2.xpose.msra.mxu0 0.0
    %250 = vmatprep.subr.mxu0 0.0
    %251 = vmatpush2.xpose.msra.mxu0 0.0
    %252 = vmatprep.subr.mxu0 0.0
    %253 = vmatpush2.xpose.msra.mxu0 0.0
    %254 = vmatprep.subr.mxu0 0.0
    %255 = vmatpush2.xpose.msra.mxu0 0.0
    %256 = vmatprep.subr.mxu0 0.0
    %257 = vmatpush2.xpose.msra.mxu0 0.0
    %258 = vmatprep.subr.mxu0 0.0
    %259 = vmatpush2.xpose.msra.mxu0 0.0
    %260 = vmatprep.subr.mxu0 0.0
    %261 = vmatpush2.xpose.msra.mxu0 0.0
    %262 = vmatprep.subr.mxu0 0.0
    %263 = vmatpush2.xpose.msra.mxu0 0.0
    %264 = vmatprep.subr.mxu0 0.0
    %265 = vmatpush2.xpose.msra.mxu0 0.0
    %266 = vmatprep.mubr.f32.mxu0 0.0
    %267 = vmatmul.mubr.f32.gmra.mxu0 %v198
    %v268 = vpop.f32.mrf.mxu0
    %v269 = vadd.f32 0.0, %v268
    %v270 = vpop.f32.mrf.mxu0
    %271 = vdwg.mxu0
    %272 = vrot.lane.b32.xlu0 %v177, 96
    %v273 = vpop.permute.xlu0 %272
    %v274 = vsel %vm197, %v177, 0
    %v276 = vsel %vm197, %v273, 0
    %278 = vmatprep.subr.mxu0 0.0
    %279 = vmatpush1.xpose.msra.mxu0 0.0
    %280 = vmatprep.subr.mxu0 0.0
    %281 = vmatpush1.xpose.msra.mxu0 0.0
    %282 = vmatprep.subr.mxu0 0.0
    %283 = vmatpush1.xpose.msra.mxu0 0.0
    %284 = vmatprep.subr.mxu0 0.0
    %285 = vmatpush1.xpose.msra.mxu0 0.0
    %286 = vmatprep.subr.mxu0 0.0
    %287 = vmatpush1.xpose.msra.mxu0 0.0
    %288 = vmatprep.subr.mxu0 0.0
    %289 = vmatpush1.xpose.msra.mxu0 0.0
    %290 = vmatprep.subr.mxu0 0.0
    %291 = vmatpush1.xpose.msra.mxu0 0.0
    %292 = vmatprep.subr.mxu0 0.0
    %293 = vmatpush1.xpose.msra.mxu0 0.0
    %294 = vmatprep.subr.mxu0 0.0
    %295 = vmatpush1.xpose.msra.mxu0 0.0
    %296 = vmatprep.subr.mxu0 0.0
    %297 = vmatpush1.xpose.msra.mxu0 0.0
    %298 = vmatprep.subr.mxu0 0.0
    %299 = vmatpush1.xpose.msra.mxu0 0.0
    %300 = vmatprep.subr.mxu0 0.0
    %301 = vmatpush1.xpose.msra.mxu0 0.0
    %302 = vmatprep.subr.mxu0 0.0
    %303 = vmatpush1.xpose.msra.mxu0 0.0
    %304 = vmatprep.subr.mxu0 0.0
    %305 = vmatpush1.xpose.msra.mxu0 0.0
    %306 = vmatprep.subr.mxu0 0.0
    %307 = vmatpush1.xpose.msra.mxu0 0.0
    %308 = vmatprep.subr.mxu0 0.0
    %309 = vmatpush1.xpose.msra.mxu0 %v276
    %310 = vmatprep.subr.mxu0 0.0
    %311 = vmatpush2.xpose.msra.mxu0 0.0
    %312 = vmatprep.subr.mxu0 0.0
    %313 = vmatpush2.xpose.msra.mxu0 0.0
    %314 = vmatprep.subr.mxu0 0.0
    %315 = vmatpush2.xpose.msra.mxu0 0.0
    %316 = vmatprep.subr.mxu0 0.0
    %317 = vmatpush2.xpose.msra.mxu0 0.0
    %318 = vmatprep.subr.mxu0 0.0
    %319 = vmatpush2.xpose.msra.mxu0 0.0
    %320 = vmatprep.subr.mxu0 0.0
    %321 = vmatpush2.xpose.msra.mxu0 0.0
    %322 = vmatprep.subr.mxu0 0.0
    %323 = vmatpush2.xpose.msra.mxu0 0.0
    %324 = vmatprep.subr.mxu0 0.0
    %325 = vmatpush2.xpose.msra.mxu0 0.0
    %326 = vmatprep.subr.mxu0 0.0
    %327 = vmatpush2.xpose.msra.mxu0 0.0
    %328 = vmatprep.subr.mxu0 0.0
    %329 = vmatpush2.xpose.msra.mxu0 0.0
    %330 = vmatprep.subr.mxu0 0.0
    %331 = vmatpush2.xpose.msra.mxu0 0.0
    %332 = vmatprep.subr.mxu0 0.0
    %333 = vmatpush2.xpose.msra.mxu0 0.0
    %334 = vmatprep.subr.mxu0 0.0
    %335 = vmatpush2.xpose.msra.mxu0 0.0
    %336 = vmatprep.subr.mxu0 0.0
    %337 = vmatpush2.xpose.msra.mxu0 0.0
    %338 = vmatprep.subr.mxu0 0.0
    %339 = vmatpush2.xpose.msra.mxu0 0.0
    %340 = vmatprep.subr.mxu0 0.0
    %341 = vmatpush2.xpose.msra.mxu0 0.0
    %342 = vmatprep.mubr.f32.mxu0 0.0
    %343 = vmatmul.mubr.f32.gmra.mxu0 %v274
    %v344 = vpop.f32.mrf.mxu0
    %v345 = vadd.f32 0.0, %v344
    %v346 = vpop.f32.mrf.mxu0
    %347 = vdwg.mxu0
    %348 = vrot.lane.b32.xlu0 %v179, 96
    %v349 = vpop.permute.xlu0 %348
    %v350 = vsel %vm197, %v179, 0
    %v352 = vsel %vm197, %v349, 0
    %354 = vmatprep.subr.mxu0 0.0
    %355 = vmatpush1.xpose.msra.mxu0 0.0
    %356 = vmatprep.subr.mxu0 0.0
    %357 = vmatpush1.xpose.msra.mxu0 0.0
    %358 = vmatprep.subr.mxu0 0.0
    %359 = vmatpush1.xpose.msra.mxu0 0.0
    %360 = vmatprep.subr.mxu0 0.0
    %361 = vmatpush1.xpose.msra.mxu0 0.0
    %362 = vmatprep.subr.mxu0 0.0
    %363 = vmatpush1.xpose.msra.mxu0 0.0
    %364 = vmatprep.subr.mxu0 0.0
    %365 = vmatpush1.xpose.msra.mxu0 0.0
    %366 = vmatprep.subr.mxu0 0.0
    %367 = vmatpush1.xpose.msra.mxu0 0.0
    %368 = vmatprep.subr.mxu0 0.0
    %369 = vmatpush1.xpose.msra.mxu0 0.0
    %370 = vmatprep.subr.mxu0 0.0
    %371 = vmatpush1.xpose.msra.mxu0 0.0
    %372 = vmatprep.subr.mxu0 0.0
    %373 = vmatpush1.xpose.msra.mxu0 0.0
    %374 = vmatprep.subr.mxu0 0.0
    %375 = vmatpush1.xpose.msra.mxu0 0.0
    %376 = vmatprep.subr.mxu0 0.0
    %377 = vmatpush1.xpose.msra.mxu0 0.0
    %378 = vmatprep.subr.mxu0 0.0
    %379 = vmatpush1.xpose.msra.mxu0 0.0
    %380 = vmatprep.subr.mxu0 0.0
    %381 = vmatpush1.xpose.msra.mxu0 0.0
    %382 = vmatprep.subr.mxu0 0.0
    %383 = vmatpush1.xpose.msra.mxu0 0.0
    %384 = vmatprep.subr.mxu0 0.0
    %385 = vmatpush1.xpose.msra.mxu0 %v352
    %386 = vmatprep.subr.mxu0 0.0
    %387 = vmatpush2.xpose.msra.mxu0 0.0
    %388 = vmatprep.subr.mxu0 0.0
    %389 = vmatpush2.xpose.msra.mxu0 0.0
    %390 = vmatprep.subr.mxu0 0.0
    %391 = vmatpush2.xpose.msra.mxu0 0.0
    %392 = vmatprep.subr.mxu0 0.0
    %393 = vmatpush2.xpose.msra.mxu0 0.0
    %394 = vmatprep.subr.mxu0 0.0
    %395 = vmatpush2.xpose.msra.mxu0 0.0
    %396 = vmatprep.subr.mxu0 0.0
    %397 = vmatpush2.xpose.msra.mxu0 0.0
    %398 = vmatprep.subr.mxu0 0.0
    %399 = vmatpush2.xpose.msra.mxu0 0.0
    %400 = vmatprep.subr.mxu0 0.0
    %401 = vmatpush2.xpose.msra.mxu0 0.0
    %402 = vmatprep.subr.mxu0 0.0
    %403 = vmatpush2.xpose.msra.mxu0 0.0
    %404 = vmatprep.subr.mxu0 0.0
    %405 = vmatpush2.xpose.msra.mxu0 0.0
    %406 = vmatprep.subr.mxu0 0.0
    %407 = vmatpush2.xpose.msra.mxu0 0.0
    %408 = vmatprep.subr.mxu0 0.0
    %409 = vmatpush2.xpose.msra.mxu0 0.0
    %410 = vmatprep.subr.mxu0 0.0
    %411 = vmatpush2.xpose.msra.mxu0 0.0
    %412 = vmatprep.subr.mxu0 0.0
    %413 = vmatpush2.xpose.msra.mxu0 0.0
    %414 = vmatprep.subr.mxu0 0.0
    %415 = vmatpush2.xpose.msra.mxu0 0.0
    %416 = vmatprep.subr.mxu0 0.0
    %417 = vmatpush2.xpose.msra.mxu0 0.0
    %418 = vmatprep.mubr.f32.mxu0 0.0
    %419 = vmatmul.mubr.f32.gmra.mxu0 %v350
    %v420 = vpop.f32.mrf.mxu0
    %v421 = vadd.f32 0.0, %v420
    %v422 = vpop.f32.mrf.mxu0
    %423 = vdwg.mxu0
    %424 = vrot.lane.b32.xlu0 %v181, 96
    %v425 = vpop.permute.xlu0 %424
    %v426 = vsel %vm197, %v181, 0
    %v428 = vsel %vm197, %v425, 0
    %430 = vmatprep.subr.mxu0 0.0
    %431 = vmatpush1.xpose.msra.mxu0 0.0
    %432 = vmatprep.subr.mxu0 0.0
    %433 = vmatpush1.xpose.msra.mxu0 0.0
    %434 = vmatprep.subr.mxu0 0.0
    %435 = vmatpush1.xpose.msra.mxu0 0.0
    %436 = vmatprep.subr.mxu0 0.0
    %437 = vmatpush1.xpose.msra.mxu0 0.0
    %438 = vmatprep.subr.mxu0 0.0
    %439 = vmatpush1.xpose.msra.mxu0 0.0
    %440 = vmatprep.subr.mxu0 0.0
    %441 = vmatpush1.xpose.msra.mxu0 0.0
    %442 = vmatprep.subr.mxu0 0.0
    %443 = vmatpush1.xpose.msra.mxu0 0.0
    %444 = vmatprep.subr.mxu0 0.0
    %445 = vmatpush1.xpose.msra.mxu0 0.0
    %446 = vmatprep.subr.mxu0 0.0
    %447 = vmatpush1.xpose.msra.mxu0 0.0
    %448 = vmatprep.subr.mxu0 0.0
    %449 = vmatpush1.xpose.msra.mxu0 0.0
    %450 = vmatprep.subr.mxu0 0.0
    %451 = vmatpush1.xpose.msra.mxu0 0.0
    %452 = vmatprep.subr.mxu0 0.0
    %453 = vmatpush1.xpose.msra.mxu0 0.0
    %454 = vmatprep.subr.mxu0 0.0
    %455 = vmatpush1.xpose.msra.mxu0 0.0
    %456 = vmatprep.subr.mxu0 0.0
    %457 = vmatpush1.xpose.msra.mxu0 0.0
    %458 = vmatprep.subr.mxu0 0.0
    %459 = vmatpush1.xpose.msra.mxu0 0.0
    %460 = vmatprep.subr.mxu0 0.0
    %461 = vmatpush1.xpose.msra.mxu0 %v428
    %462 = vmatprep.subr.mxu0 0.0
    %463 = vmatpush2.xpose.msra.mxu0 0.0
    %464 = vmatprep.subr.mxu0 0.0
    %465 = vmatpush2.xpose.msra.mxu0 0.0
    %466 = vmatprep.subr.mxu0 0.0
    %467 = vmatpush2.xpose.msra.mxu0 0.0
    %468 = vmatprep.subr.mxu0 0.0
    %469 = vmatpush2.xpose.msra.mxu0 0.0
    %470 = vmatprep.subr.mxu0 0.0
    %471 = vmatpush2.xpose.msra.mxu0 0.0
    %472 = vmatprep.subr.mxu0 0.0
    %473 = vmatpush2.xpose.msra.mxu0 0.0
    %474 = vmatprep.subr.mxu0 0.0
    %475 = vmatpush2.xpose.msra.mxu0 0.0
    %476 = vmatprep.subr.mxu0 0.0
    %477 = vmatpush2.xpose.msra.mxu0 0.0
    %478 = vmatprep.subr.mxu0 0.0
    %479 = vmatpush2.xpose.msra.mxu0 0.0
    %480 = vmatprep.subr.mxu0 0.0
    %481 = vmatpush2.xpose.msra.mxu0 0.0
    %482 = vmatprep.subr.mxu0 0.0
    %483 = vmatpush2.xpose.msra.mxu0 0.0
    %484 = vmatprep.subr.mxu0 0.0
    %485 = vmatpush2.xpose.msra.mxu0 0.0
    %486 = vmatprep.subr.mxu0 0.0
    %487 = vmatpush2.xpose.msra.mxu0 0.0
    %488 = vmatprep.subr.mxu0 0.0
    %489 = vmatpush2.xpose.msra.mxu0 0.0
    %490 = vmatprep.subr.mxu0 0.0
    %491 = vmatpush2.xpose.msra.mxu0 0.0
    %492 = vmatprep.subr.mxu0 0.0
    %493 = vmatpush2.xpose.msra.mxu0 0.0
    %494 = vmatprep.mubr.f32.mxu0 0.0
    %495 = vmatmul.mubr.f32.gmra.mxu0 %v426
    %v496 = vpop.f32.mrf.mxu0
    %v497 = vadd.f32 0.0, %v496
    %v498 = vpop.f32.mrf.mxu0
    %499 = vdwg.mxu0
    %500 = vrot.lane.b32.xlu0 %v172, 96
    %v501 = vpop.permute.xlu0 %500
    %v502 = vsel %vm197, %v172, 0
    %v504 = vsel %vm197, %v501, 0
    %506 = vmatprep.subr.mxu0 0.0
    %507 = vmatpush1.xpose.msra.mxu0 0.0
    %508 = vmatprep.subr.mxu0 0.0
    %509 = vmatpush1.xpose.msra.mxu0 0.0
    %510 = vmatprep.subr.mxu0 0.0
    %511 = vmatpush1.xpose.msra.mxu0 0.0
    %512 = vmatprep.subr.mxu0 0.0
    %513 = vmatpush1.xpose.msra.mxu0 0.0
    %514 = vmatprep.subr.mxu0 0.0
    %515 = vmatpush1.xpose.msra.mxu0 0.0
    %516 = vmatprep.subr.mxu0 0.0
    %517 = vmatpush1.xpose.msra.mxu0 0.0
    %518 = vmatprep.subr.mxu0 0.0
    %519 = vmatpush1.xpose.msra.mxu0 0.0
    %520 = vmatprep.subr.mxu0 0.0
    %521 = vmatpush1.xpose.msra.mxu0 0.0
    %522 = vmatprep.subr.mxu0 0.0
    %523 = vmatpush1.xpose.msra.mxu0 0.0
    %524 = vmatprep.subr.mxu0 0.0
    %525 = vmatpush1.xpose.msra.mxu0 0.0
    %526 = vmatprep.subr.mxu0 0.0
    %527 = vmatpush1.xpose.msra.mxu0 0.0
    %528 = vmatprep.subr.mxu0 0.0
    %529 = vmatpush1.xpose.msra.mxu0 0.0
    %530 = vmatprep.subr.mxu0 0.0
    %531 = vmatpush1.xpose.msra.mxu0 0.0
    %532 = vmatprep.subr.mxu0 0.0
    %533 = vmatpush1.xpose.msra.mxu0 0.0
    %534 = vmatprep.subr.mxu0 0.0
    %535 = vmatpush1.xpose.msra.mxu0 0.0
    %536 = vmatprep.subr.mxu0 0.0
    %537 = vmatpush1.xpose.msra.mxu0 %v504
    %538 = vmatprep.subr.mxu0 0.0
    %539 = vmatpush2.xpose.msra.mxu0 0.0
    %540 = vmatprep.subr.mxu0 0.0
    %541 = vmatpush2.xpose.msra.mxu0 0.0
    %542 = vmatprep.subr.mxu0 0.0
    %543 = vmatpush2.xpose.msra.mxu0 0.0
    %544 = vmatprep.subr.mxu0 0.0
    %545 = vmatpush2.xpose.msra.mxu0 0.0
    %546 = vmatprep.subr.mxu0 0.0
    %547 = vmatpush2.xpose.msra.mxu0 0.0
    %548 = vmatprep.subr.mxu0 0.0
    %549 = vmatpush2.xpose.msra.mxu0 0.0
    %550 = vmatprep.subr.mxu0 0.0
    %551 = vmatpush2.xpose.msra.mxu0 0.0
    %552 = vmatprep.subr.mxu0 0.0
    %553 = vmatpush2.xpose.msra.mxu0 0.0
    %554 = vmatprep.subr.mxu0 0.0
    %555 = vmatpush2.xpose.msra.mxu0 0.0
    %556 = vmatprep.subr.mxu0 0.0
    %557 = vmatpush2.xpose.msra.mxu0 0.0
    %558 = vmatprep.subr.mxu0 0.0
    %559 = vmatpush2.xpose.msra.mxu0 0.0
    %560 = vmatprep.subr.mxu0 0.0
    %561 = vmatpush2.xpose.msra.mxu0 0.0
    %562 = vmatprep.subr.mxu0 0.0
    %563 = vmatpush2.xpose.msra.mxu0 0.0
    %564 = vmatprep.subr.mxu0 0.0
    %565 = vmatpush2.xpose.msra.mxu0 0.0
    %566 = vmatprep.subr.mxu0 0.0
    %567 = vmatpush2.xpose.msra.mxu0 0.0
    %568 = vmatprep.subr.mxu0 0.0
    %569 = vmatpush2.xpose.msra.mxu0 0.0
    %570 = vmatprep.mubr.f32.mxu0 0.0
    %571 = vmatmul.mubr.f32.gmra.mxu0 %v502
    %v572 = vpop.f32.mrf.mxu0
    %v573 = vadd.f32 0.0, %v572
    %v574 = vpop.f32.mrf.mxu0
    %575 = vdwg.mxu0
    %576 = vrot.lane.b32.xlu0 %v184, 96
    %v577 = vpop.permute.xlu0 %576
    %v578 = vsel %vm197, %v184, 0
    %v580 = vsel %vm197, %v577, 0
    %582 = vmatprep.subr.mxu0 0.0
    %583 = vmatpush1.xpose.msra.mxu0 0.0
    %584 = vmatprep.subr.mxu0 0.0
    %585 = vmatpush1.xpose.msra.mxu0 0.0
    %586 = vmatprep.subr.mxu0 0.0
    %587 = vmatpush1.xpose.msra.mxu0 0.0
    %588 = vmatprep.subr.mxu0 0.0
    %589 = vmatpush1.xpose.msra.mxu0 0.0
    %590 = vmatprep.subr.mxu0 0.0
    %591 = vmatpush1.xpose.msra.mxu0 0.0
    %592 = vmatprep.subr.mxu0 0.0
    %593 = vmatpush1.xpose.msra.mxu0 0.0
    %594 = vmatprep.subr.mxu0 0.0
    %595 = vmatpush1.xpose.msra.mxu0 0.0
    %596 = vmatprep.subr.mxu0 0.0
    %597 = vmatpush1.xpose.msra.mxu0 0.0
    %598 = vmatprep.subr.mxu0 0.0
    %599 = vmatpush1.xpose.msra.mxu0 0.0
    %600 = vmatprep.subr.mxu0 0.0
    %601 = vmatpush1.xpose.msra.mxu0 0.0
    %602 = vmatprep.subr.mxu0 0.0
    %603 = vmatpush1.xpose.msra.mxu0 0.0
    %604 = vmatprep.subr.mxu0 0.0
    %605 = vmatpush1.xpose.msra.mxu0 0.0
    %606 = vmatprep.subr.mxu0 0.0
    %607 = vmatpush1.xpose.msra.mxu0 0.0
    %608 = vmatprep.subr.mxu0 0.0
    %609 = vmatpush1.xpose.msra.mxu0 0.0
    %610 = vmatprep.subr.mxu0 0.0
    %611 = vmatpush1.xpose.msra.mxu0 0.0
    %612 = vmatprep.subr.mxu0 0.0
    %613 = vmatpush1.xpose.msra.mxu0 %v580
    %614 = vmatprep.subr.mxu0 0.0
    %615 = vmatpush2.xpose.msra.mxu0 0.0
    %616 = vmatprep.subr.mxu0 0.0
    %617 = vmatpush2.xpose.msra.mxu0 0.0
    %618 = vmatprep.subr.mxu0 0.0
    %619 = vmatpush2.xpose.msra.mxu0 0.0
    %620 = vmatprep.subr.mxu0 0.0
    %621 = vmatpush2.xpose.msra.mxu0 0.0
    %622 = vmatprep.subr.mxu0 0.0
    %623 = vmatpush2.xpose.msra.mxu0 0.0
    %624 = vmatprep.subr.mxu0 0.0
    %625 = vmatpush2.xpose.msra.mxu0 0.0
    %626 = vmatprep.subr.mxu0 0.0
    %627 = vmatpush2.xpose.msra.mxu0 0.0
    %628 = vmatprep.subr.mxu0 0.0
    %629 = vmatpush2.xpose.msra.mxu0 0.0
    %630 = vmatprep.subr.mxu0 0.0
    %631 = vmatpush2.xpose.msra.mxu0 0.0
    %632 = vmatprep.subr.mxu0 0.0
    %633 = vmatpush2.xpose.msra.mxu0 0.0
    %634 = vmatprep.subr.mxu0 0.0
    %635 = vmatpush2.xpose.msra.mxu0 0.0
    %636 = vmatprep.subr.mxu0 0.0
    %637 = vmatpush2.xpose.msra.mxu0 0.0
    %638 = vmatprep.subr.mxu0 0.0
    %639 = vmatpush2.xpose.msra.mxu0 0.0
    %640 = vmatprep.subr.mxu0 0.0
    %641 = vmatpush2.xpose.msra.mxu0 0.0
    %642 = vmatprep.subr.mxu0 0.0
    %643 = vmatpush2.xpose.msra.mxu0 0.0
    %644 = vmatprep.subr.mxu0 0.0
    %645 = vmatpush2.xpose.msra.mxu0 0.0
    %646 = vmatprep.mubr.f32.mxu0 0.0
    %647 = vmatmul.mubr.f32.gmra.mxu0 %v578
    %v648 = vpop.f32.mrf.mxu0
    %v649 = vadd.f32 0.0, %v648
    %v650 = vpop.f32.mrf.mxu0
    %651 = vdwg.mxu0
    %652 = vrot.lane.b32.xlu0 %v186, 96
    %v653 = vpop.permute.xlu0 %652
    %v654 = vsel %vm197, %v186, 0
    %v656 = vsel %vm197, %v653, 0
    %658 = vmatprep.subr.mxu0 0.0
    %659 = vmatpush1.xpose.msra.mxu0 0.0
    %660 = vmatprep.subr.mxu0 0.0
    %661 = vmatpush1.xpose.msra.mxu0 0.0
    %662 = vmatprep.subr.mxu0 0.0
    %663 = vmatpush1.xpose.msra.mxu0 0.0
    %664 = vmatprep.subr.mxu0 0.0
    %665 = vmatpush1.xpose.msra.mxu0 0.0
    %666 = vmatprep.subr.mxu0 0.0
    %667 = vmatpush1.xpose.msra.mxu0 0.0
    %668 = vmatprep.subr.mxu0 0.0
    %669 = vmatpush1.xpose.msra.mxu0 0.0
    %670 = vmatprep.subr.mxu0 0.0
    %671 = vmatpush1.xpose.msra.mxu0 0.0
    %672 = vmatprep.subr.mxu0 0.0
    %673 = vmatpush1.xpose.msra.mxu0 0.0
    %674 = vmatprep.subr.mxu0 0.0
    %675 = vmatpush1.xpose.msra.mxu0 0.0
    %676 = vmatprep.subr.mxu0 0.0
    %677 = vmatpush1.xpose.msra.mxu0 0.0
    %678 = vmatprep.subr.mxu0 0.0
    %679 = vmatpush1.xpose.msra.mxu0 0.0
    %680 = vmatprep.subr.mxu0 0.0
    %681 = vmatpush1.xpose.msra.mxu0 0.0
    %682 = vmatprep.subr.mxu0 0.0
    %683 = vmatpush1.xpose.msra.mxu0 0.0
    %684 = vmatprep.subr.mxu0 0.0
    %685 = vmatpush1.xpose.msra.mxu0 0.0
    %686 = vmatprep.subr.mxu0 0.0
    %687 = vmatpush1.xpose.msra.mxu0 0.0
    %688 = vmatprep.subr.mxu0 0.0
    %689 = vmatpush1.xpose.msra.mxu0 %v656
    %690 = vmatprep.subr.mxu0 0.0
    %691 = vmatpush2.xpose.msra.mxu0 0.0
    %692 = vmatprep.subr.mxu0 0.0
    %693 = vmatpush2.xpose.msra.mxu0 0.0
    %694 = vmatprep.subr.mxu0 0.0
    %695 = vmatpush2.xpose.msra.mxu0 0.0
    %696 = vmatprep.subr.mxu0 0.0
    %697 = vmatpush2.xpose.msra.mxu0 0.0
    %698 = vmatprep.subr.mxu0 0.0
    %699 = vmatpush2.xpose.msra.mxu0 0.0
    %700 = vmatprep.subr.mxu0 0.0
    %701 = vmatpush2.xpose.msra.mxu0 0.0
    %702 = vmatprep.subr.mxu0 0.0
    %703 = vmatpush2.xpose.msra.mxu0 0.0
    %704 = vmatprep.subr.mxu0 0.0
    %705 = vmatpush2.xpose.msra.mxu0 0.0
    %706 = vmatprep.subr.mxu0 0.0
    %707 = vmatpush2.xpose.msra.mxu0 0.0
    %708 = vmatprep.subr.mxu0 0.0
    %709 = vmatpush2.xpose.msra.mxu0 0.0
    %710 = vmatprep.subr.mxu0 0.0
    %711 = vmatpush2.xpose.msra.mxu0 0.0
    %712 = vmatprep.subr.mxu0 0.0
    %713 = vmatpush2.xpose.msra.mxu0 0.0
    %714 = vmatprep.subr.mxu0 0.0
    %715 = vmatpush2.xpose.msra.mxu0 0.0
    %716 = vmatprep.subr.mxu0 0.0
    %717 = vmatpush2.xpose.msra.mxu0 0.0
    %718 = vmatprep.subr.mxu0 0.0
    %719 = vmatpush2.xpose.msra.mxu0 0.0
    %720 = vmatprep.subr.mxu0 0.0
    %721 = vmatpush2.xpose.msra.mxu0 0.0
    %722 = vmatprep.mubr.f32.mxu0 0.0
    %723 = vmatmul.mubr.f32.gmra.mxu0 %v654
    %v724 = vpop.f32.mrf.mxu0
    %v725 = vadd.f32 0.0, %v724
    %v726 = vpop.f32.mrf.mxu0
    %727 = vdwg.mxu0
    %728 = vrot.lane.b32.xlu0 %v188, 96
    %v729 = vpop.permute.xlu0 %728
    %v730 = vsel %vm197, %v188, 0
    %v732 = vsel %vm197, %v729, 0
    %734 = vmatprep.subr.mxu0 0.0
    %735 = vmatpush1.xpose.msra.mxu0 0.0
    %736 = vmatprep.subr.mxu0 0.0
    %737 = vmatpush1.xpose.msra.mxu0 0.0
    %738 = vmatprep.subr.mxu0 0.0
    %739 = vmatpush1.xpose.msra.mxu0 0.0
    %740 = vmatprep.subr.mxu0 0.0
    %741 = vmatpush1.xpose.msra.mxu0 0.0
    %742 = vmatprep.subr.mxu0 0.0
    %743 = vmatpush1.xpose.msra.mxu0 0.0
    %744 = vmatprep.subr.mxu0 0.0
    %745 = vmatpush1.xpose.msra.mxu0 0.0
    %746 = vmatprep.subr.mxu0 0.0
    %747 = vmatpush1.xpose.msra.mxu0 0.0
    %748 = vmatprep.subr.mxu0 0.0
    %749 = vmatpush1.xpose.msra.mxu0 0.0
    %750 = vmatprep.subr.mxu0 0.0
    %751 = vmatpush1.xpose.msra.mxu0 0.0
    %752 = vmatprep.subr.mxu0 0.0
    %753 = vmatpush1.xpose.msra.mxu0 0.0
    %754 = vmatprep.subr.mxu0 0.0
    %755 = vmatpush1.xpose.msra.mxu0 0.0
    %756 = vmatprep.subr.mxu0 0.0
    %757 = vmatpush1.xpose.msra.mxu0 0.0
    %758 = vmatprep.subr.mxu0 0.0
    %759 = vmatpush1.xpose.msra.mxu0 0.0
    %760 = vmatprep.subr.mxu0 0.0
    %761 = vmatpush1.xpose.msra.mxu0 0.0
    %762 = vmatprep.subr.mxu0 0.0
    %763 = vmatpush1.xpose.msra.mxu0 0.0
    %764 = vmatprep.subr.mxu0 0.0
    %765 = vmatpush1.xpose.msra.mxu0 %v732
    %766 = vmatprep.subr.mxu0 0.0
    %767 = vmatpush2.xpose.msra.mxu0 0.0
    %768 = vmatprep.subr.mxu0 0.0
    %769 = vmatpush2.xpose.msra.mxu0 0.0
    %770 = vmatprep.subr.mxu0 0.0
    %771 = vmatpush2.xpose.msra.mxu0 0.0
    %772 = vmatprep.subr.mxu0 0.0
    %773 = vmatpush2.xpose.msra.mxu0 0.0
    %774 = vmatprep.subr.mxu0 0.0
    %775 = vmatpush2.xpose.msra.mxu0 0.0
    %776 = vmatprep.subr.mxu0 0.0
    %777 = vmatpush2.xpose.msra.mxu0 0.0
    %778 = vmatprep.subr.mxu0 0.0
    %779 = vmatpush2.xpose.msra.mxu0 0.0
    %780 = vmatprep.subr.mxu0 0.0
    %781 = vmatpush2.xpose.msra.mxu0 0.0
    %782 = vmatprep.subr.mxu0 0.0
    %783 = vmatpush2.xpose.msra.mxu0 0.0
    %784 = vmatprep.subr.mxu0 0.0
    %785 = vmatpush2.xpose.msra.mxu0 0.0
    %786 = vmatprep.subr.mxu0 0.0
    %787 = vmatpush2.xpose.msra.mxu0 0.0
    %788 = vmatprep.subr.mxu0 0.0
    %789 = vmatpush2.xpose.msra.mxu0 0.0
    %790 = vmatprep.subr.mxu0 0.0
    %791 = vmatpush2.xpose.msra.mxu0 0.0
    %792 = vmatprep.subr.mxu0 0.0
    %793 = vmatpush2.xpose.msra.mxu0 0.0
    %794 = vmatprep.subr.mxu0 0.0
    %795 = vmatpush2.xpose.msra.mxu0 0.0
    %796 = vmatprep.subr.mxu0 0.0
    %797 = vmatpush2.xpose.msra.mxu0 0.0
    %798 = vmatprep.mubr.f32.mxu0 0.0
    %799 = vmatmul.mubr.f32.gmra.mxu0 %v730
    %v800 = vpop.f32.mrf.mxu0
    %v801 = vadd.f32 0.0, %v800
    %v802 = vpop.f32.mrf.mxu0
    %803 = vdwg.mxu0
    %v804 = vmul.f32 %v269, 0.17677669
    %v805 = vmul.f32 %v345, 0.17677669
    %v806 = vmul.f32 %v421, 0.17677669
    %v807 = vmul.f32 %v497, 0.17677669
    %v808 = vmul.f32 %v573, 0.17677669
    %v809 = vmul.f32 %v649, 0.17677669
    %v810 = vmul.f32 %v725, 0.17677669
    %v811 = vmul.f32 %v801, 0.17677669
    %v812 = vadd.f32 %v804, %v194
    %v813 = vadd.f32 %v805, %v194
    %v814 = vadd.f32 %v806, %v194
    %v815 = vadd.f32 %v807, %v194
    %v816 = vadd.f32 %v808, %v194
    %v817 = vadd.f32 %v809, %v194
    %v818 = vadd.f32 %v810, %v194
    %v819 = vadd.f32 %v811, %v194
    %v820 = vsel %vm197, %v812, -inf
    %821 = vmax.xlane.f32.xlu0 %v820
    %v822 = vpop.xlane.xlu0 %821
    %v823 = vsel %vm197, %v813, -inf
    %824 = vmax.xlane.f32.xlu0 %v823
    %v825 = vpop.xlane.xlu0 %824
    %v826 = vsel %vm197, %v814, -inf
    %827 = vmax.xlane.f32.xlu0 %v826
    %v828 = vpop.xlane.xlu0 %827
    %v829 = vsel %vm197, %v815, -inf
    %830 = vmax.xlane.f32.xlu0 %v829
    %v831 = vpop.xlane.xlu0 %830
    %v832 = vsel %vm197, %v816, -inf
    %833 = vmax.xlane.f32.xlu0 %v832
    %v834 = vpop.xlane.xlu0 %833
    %v835 = vsel %vm197, %v817, -inf
    %836 = vmax.xlane.f32.xlu0 %v835
    %v837 = vpop.xlane.xlu0 %836
    %v838 = vsel %vm197, %v818, -inf
    %839 = vmax.xlane.f32.xlu0 %v838
    %v840 = vpop.xlane.xlu0 %839
    %v841 = vsel %vm197, %v819, -inf
    %842 = vmax.xlane.f32.xlu0 %v841
    %v843 = vpop.xlane.xlu0 %842
    %v844 = vsub.f32 %v812, %v822
    %v845 = vsub.f32 %v813, %v825
    %v846 = vsub.f32 %v814, %v828
    %v847 = vsub.f32 %v815, %v831
    %v848 = vsub.f32 %v816, %v834
    %v849 = vsub.f32 %v817, %v837
    %v850 = vsub.f32 %v818, %v840
    %v851 = vsub.f32 %v819, %v843
    %v852 = vmul.f32 %v844, 1.442695
    %v853 = vpow.pop %v852
    %v854 = vmul.f32 %v845, 1.442695
    %v855 = vpow.pop %v854
    %v856 = vmul.f32 %v846, 1.442695
    %v857 = vpow.pop %v856
    %v858 = vmul.f32 %v847, 1.442695
    %v859 = vpow.pop %v858
    %v860 = vmul.f32 %v848, 1.442695
    %v861 = vpow.pop %v860
    %v862 = vmul.f32 %v849, 1.442695
    %v863 = vpow.pop %v862
    %v864 = vmul.f32 %v850, 1.442695
    %v865 = vpow.pop %v864
    %v866 = vmul.f32 %v851, 1.442695
    %v867 = vpow.pop %v866
    %v868 = vsel %vm197, %v853, 0.0
    %869 = vadd.xlane.f32.xlu0 %v868
    %v870 = vpop.xlane.xlu0 %869
    %v871 = vsel %vm197, %v855, 0.0
    %872 = vadd.xlane.f32.xlu0 %v871
    %v873 = vpop.xlane.xlu0 %872
    %v874 = vsel %vm197, %v857, 0.0
    %875 = vadd.xlane.f32.xlu0 %v874
    %v876 = vpop.xlane.xlu0 %875
    %v877 = vsel %vm197, %v859, 0.0
    %878 = vadd.xlane.f32.xlu0 %v877
    %v879 = vpop.xlane.xlu0 %878
    %v880 = vsel %vm197, %v861, 0.0
    %881 = vadd.xlane.f32.xlu0 %v880
    %v882 = vpop.xlane.xlu0 %881
    %v883 = vsel %vm197, %v863, 0.0
    %884 = vadd.xlane.f32.xlu0 %v883
    %v885 = vpop.xlane.xlu0 %884
    %v886 = vsel %vm197, %v865, 0.0
    %887 = vadd.xlane.f32.xlu0 %v886
    %v888 = vpop.xlane.xlu0 %887
    %v889 = vsel %vm197, %v867, 0.0
    %890 = vadd.xlane.f32.xlu0 %v889
    %v891 = vpop.xlane.xlu0 %890
    %v892 = vrcp.pop %v870
    %v893 = vrcp.pop %v873
    %v894 = vrcp.pop %v876
    %v895 = vrcp.pop %v879
    %v896 = vrcp.pop %v882
    %v897 = vrcp.pop %v885
    %v898 = vrcp.pop %v888
    %v899 = vrcp.pop %v891
    %v900 = vmul.f32 %v853, %v892
    %v901 = vmul.f32 %v855, %v893
    %v902 = vmul.f32 %v857, %v894
    %v903 = vmul.f32 %v859, %v895
    %v904 = vmul.f32 %v861, %v896
    %v905 = vmul.f32 %v863, %v897
    %v906 = vmul.f32 %v865, %v898
    %v907 = vmul.f32 %v867, %v899
    %908 = vrot.lane.b32.xlu0 %v167, 64
    %v909 = vpop.permute.xlu0 %908
    %v912 = vsel %vm197, %v900, 0
    %914 = vmatprep.subr.mxu0 0.0
    %915 = vmatpush1.msra.mxu0 0.0
    %916 = vmatprep.subr.mxu0 0.0
    %917 = vmatpush1.msra.mxu0 0.0
    %918 = vmatprep.subr.mxu0 0.0
    %919 = vmatpush1.msra.mxu0 0.0
    %920 = vmatprep.subr.mxu0 0.0
    %921 = vmatpush1.msra.mxu0 0.0
    %922 = vmatprep.subr.mxu0 0.0
    %923 = vmatpush1.msra.mxu0 0.0
    %924 = vmatprep.subr.mxu0 0.0
    %925 = vmatpush1.msra.mxu0 0.0
    %926 = vmatprep.subr.mxu0 0.0
    %927 = vmatpush1.msra.mxu0 0.0
    %928 = vmatprep.subr.mxu0 0.0
    %929 = vmatpush1.msra.mxu0 0.0
    %930 = vmatprep.subr.mxu0 0.0
    %931 = vmatpush1.msra.mxu0 0.0
    %932 = vmatprep.subr.mxu0 0.0
    %933 = vmatpush1.msra.mxu0 0.0
    %934 = vmatprep.subr.mxu0 0.0
    %935 = vmatpush1.msra.mxu0 0.0
    %936 = vmatprep.subr.mxu0 0.0
    %937 = vmatpush1.msra.mxu0 0.0
    %938 = vmatprep.subr.mxu0 0.0
    %939 = vmatpush1.msra.mxu0 0.0
    %940 = vmatprep.subr.mxu0 0.0
    %941 = vmatpush1.msra.mxu0 0.0
    %942 = vmatprep.subr.mxu0 0.0
    %943 = vmatpush1.msra.mxu0 0.0
    %944 = vmatprep.subr.mxu0 0.0
    %945 = vmatpush1.msra.mxu0 %v909
    %946 = vmatprep.subr.mxu0 0.0
    %947 = vmatpush2.msra.mxu0 0.0
    %948 = vmatprep.subr.mxu0 0.0
    %949 = vmatpush2.msra.mxu0 0.0
    %950 = vmatprep.subr.mxu0 0.0
    %951 = vmatpush2.msra.mxu0 0.0
    %952 = vmatprep.subr.mxu0 0.0
    %953 = vmatpush2.msra.mxu0 0.0
    %954 = vmatprep.subr.mxu0 0.0
    %955 = vmatpush2.msra.mxu0 0.0
    %956 = vmatprep.subr.mxu0 0.0
    %957 = vmatpush2.msra.mxu0 0.0
    %958 = vmatprep.subr.mxu0 0.0
    %959 = vmatpush2.msra.mxu0 0.0
    %960 = vmatprep.subr.mxu0 0.0
    %961 = vmatpush2.msra.mxu0 0.0
    %962 = vmatprep.subr.mxu0 0.0
    %963 = vmatpush2.msra.mxu0 0.0
    %964 = vmatprep.subr.mxu0 0.0
    %965 = vmatpush2.msra.mxu0 0.0
    %966 = vmatprep.subr.mxu0 0.0
    %967 = vmatpush2.msra.mxu0 0.0
    %968 = vmatprep.subr.mxu0 0.0
    %969 = vmatpush2.msra.mxu0 0.0
    %970 = vmatprep.subr.mxu0 0.0
    %971 = vmatpush2.msra.mxu0 0.0
    %972 = vmatprep.subr.mxu0 0.0
    %973 = vmatpush2.msra.mxu0 0.0
    %974 = vmatprep.subr.mxu0 0.0
    %975 = vmatpush2.msra.mxu0 0.0
    %976 = vmatprep.subr.mxu0 0.0
    %977 = vmatpush2.msra.mxu0 0.0
    %978 = vmatprep.mubr.f32.mxu0 0.0
    %979 = vmatmul.mubr.f32.gmra.mxu0 %v912
    %v980 = vpop.f32.mrf.mxu0
    %v981 = vadd.f32 0.0, %v980
    %v982 = vpop.f32.mrf.mxu0
    %983 = vdwg.mxu0
    %984 = vrot.lane.b32.xlu0 %v177, 64
    %v985 = vpop.permute.xlu0 %984
    %v988 = vsel %vm197, %v901, 0
    %990 = vmatprep.subr.mxu0 0.0
    %991 = vmatpush1.msra.mxu0 0.0
    %992 = vmatprep.subr.mxu0 0.0
    %993 = vmatpush1.msra.mxu0 0.0
    %994 = vmatprep.subr.mxu0 0.0
    %995 = vmatpush1.msra.mxu0 0.0
    %996 = vmatprep.subr.mxu0 0.0
    %997 = vmatpush1.msra.mxu0 0.0
    %998 = vmatprep.subr.mxu0 0.0
    %999 = vmatpush1.msra.mxu0 0.0
    %1000 = vmatprep.subr.mxu0 0.0
    %1001 = vmatpush1.msra.mxu0 0.0
    %1002 = vmatprep.subr.mxu0 0.0
    %1003 = vmatpush1.msra.mxu0 0.0
    %1004 = vmatprep.subr.mxu0 0.0
    %1005 = vmatpush1.msra.mxu0 0.0
    %1006 = vmatprep.subr.mxu0 0.0
    %1007 = vmatpush1.msra.mxu0 0.0
    %1008 = vmatprep.subr.mxu0 0.0
    %1009 = vmatpush1.msra.mxu0 0.0
    %1010 = vmatprep.subr.mxu0 0.0
    %1011 = vmatpush1.msra.mxu0 0.0
    %1012 = vmatprep.subr.mxu0 0.0
    %1013 = vmatpush1.msra.mxu0 0.0
    %1014 = vmatprep.subr.mxu0 0.0
    %1015 = vmatpush1.msra.mxu0 0.0
    %1016 = vmatprep.subr.mxu0 0.0
    %1017 = vmatpush1.msra.mxu0 0.0
    %1018 = vmatprep.subr.mxu0 0.0
    %1019 = vmatpush1.msra.mxu0 0.0
    %1020 = vmatprep.subr.mxu0 0.0
    %1021 = vmatpush1.msra.mxu0 %v985
    %1022 = vmatprep.subr.mxu0 0.0
    %1023 = vmatpush2.msra.mxu0 0.0
    %1024 = vmatprep.subr.mxu0 0.0
    %1025 = vmatpush2.msra.mxu0 0.0
    %1026 = vmatprep.subr.mxu0 0.0
    %1027 = vmatpush2.msra.mxu0 0.0
    %1028 = vmatprep.subr.mxu0 0.0
    %1029 = vmatpush2.msra.mxu0 0.0
    %1030 = vmatprep.subr.mxu0 0.0
    %1031 = vmatpush2.msra.mxu0 0.0
    %1032 = vmatprep.subr.mxu0 0.0
    %1033 = vmatpush2.msra.mxu0 0.0
    %1034 = vmatprep.subr.mxu0 0.0
    %1035 = vmatpush2.msra.mxu0 0.0
    %1036 = vmatprep.subr.mxu0 0.0
    %1037 = vmatpush2.msra.mxu0 0.0
    %1038 = vmatprep.subr.mxu0 0.0
    %1039 = vmatpush2.msra.mxu0 0.0
    %1040 = vmatprep.subr.mxu0 0.0
    %1041 = vmatpush2.msra.mxu0 0.0
    %1042 = vmatprep.subr.mxu0 0.0
    %1043 = vmatpush2.msra.mxu0 0.0
    %1044 = vmatprep.subr.mxu0 0.0
    %1045 = vmatpush2.msra.mxu0 0.0
    %1046 = vmatprep.subr.mxu0 0.0
    %1047 = vmatpush2.msra.mxu0 0.0
    %1048 = vmatprep.subr.mxu0 0.0
    %1049 = vmatpush2.msra.mxu0 0.0
    %1050 = vmatprep.subr.mxu0 0.0
    %1051 = vmatpush2.msra.mxu0 0.0
    %1052 = vmatprep.subr.mxu0 0.0
    %1053 = vmatpush2.msra.mxu0 0.0
    %1054 = vmatprep.mubr.f32.mxu0 0.0
    %1055 = vmatmul.mubr.f32.gmra.mxu0 %v988
    %v1056 = vpop.f32.mrf.mxu0
    %v1057 = vadd.f32 0.0, %v1056
    %v1058 = vpop.f32.mrf.mxu0
    %1059 = vdwg.mxu0
    %1060 = vrot.lane.b32.xlu0 %v179, 64
    %v1061 = vpop.permute.xlu0 %1060
    %v1064 = vsel %vm197, %v902, 0
    %1066 = vmatprep.subr.mxu0 0.0
    %1067 = vmatpush1.msra.mxu0 0.0
    %1068 = vmatprep.subr.mxu0 0.0
    %1069 = vmatpush1.msra.mxu0 0.0
    %1070 = vmatprep.subr.mxu0 0.0
    %1071 = vmatpush1.msra.mxu0 0.0
    %1072 = vmatprep.subr.mxu0 0.0
    %1073 = vmatpush1.msra.mxu0 0.0
    %1074 = vmatprep.subr.mxu0 0.0
    %1075 = vmatpush1.msra.mxu0 0.0
    %1076 = vmatprep.subr.mxu0 0.0
    %1077 = vmatpush1.msra.mxu0 0.0
    %1078 = vmatprep.subr.mxu0 0.0
    %1079 = vmatpush1.msra.mxu0 0.0
    %1080 = vmatprep.subr.mxu0 0.0
    %1081 = vmatpush1.msra.mxu0 0.0
    %1082 = vmatprep.subr.mxu0 0.0
    %1083 = vmatpush1.msra.mxu0 0.0
    %1084 = vmatprep.subr.mxu0 0.0
    %1085 = vmatpush1.msra.mxu0 0.0
    %1086 = vmatprep.subr.mxu0 0.0
    %1087 = vmatpush1.msra.mxu0 0.0
    %1088 = vmatprep.subr.mxu0 0.0
    %1089 = vmatpush1.msra.mxu0 0.0
    %1090 = vmatprep.subr.mxu0 0.0
    %1091 = vmatpush1.msra.mxu0 0.0
    %1092 = vmatprep.subr.mxu0 0.0
    %1093 = vmatpush1.msra.mxu0 0.0
    %1094 = vmatprep.subr.mxu0 0.0
    %1095 = vmatpush1.msra.mxu0 0.0
    %1096 = vmatprep.subr.mxu0 0.0
    %1097 = vmatpush1.msra.mxu0 %v1061
    %1098 = vmatprep.subr.mxu0 0.0
    %1099 = vmatpush2.msra.mxu0 0.0
    %1100 = vmatprep.subr.mxu0 0.0
    %1101 = vmatpush2.msra.mxu0 0.0
    %1102 = vmatprep.subr.mxu0 0.0
    %1103 = vmatpush2.msra.mxu0 0.0
    %1104 = vmatprep.subr.mxu0 0.0
    %1105 = vmatpush2.msra.mxu0 0.0
    %1106 = vmatprep.subr.mxu0 0.0
    %1107 = vmatpush2.msra.mxu0 0.0
    %1108 = vmatprep.subr.mxu0 0.0
    %1109 = vmatpush2.msra.mxu0 0.0
    %1110 = vmatprep.subr.mxu0 0.0
    %1111 = vmatpush2.msra.mxu0 0.0
    %1112 = vmatprep.subr.mxu0 0.0
    %1113 = vmatpush2.msra.mxu0 0.0
    %1114 = vmatprep.subr.mxu0 0.0
    %1115 = vmatpush2.msra.mxu0 0.0
    %1116 = vmatprep.subr.mxu0 0.0
    %1117 = vmatpush2.msra.mxu0 0.0
    %1118 = vmatprep.subr.mxu0 0.0
    %1119 = vmatpush2.msra.mxu0 0.0
    %1120 = vmatprep.subr.mxu0 0.0
    %1121 = vmatpush2.msra.mxu0 0.0
    %1122 = vmatprep.subr.mxu0 0.0
    %1123 = vmatpush2.msra.mxu0 0.0
    %1124 = vmatprep.subr.mxu0 0.0
    %1125 = vmatpush2.msra.mxu0 0.0
    %1126 = vmatprep.subr.mxu0 0.0
    %1127 = vmatpush2.msra.mxu0 0.0
    %1128 = vmatprep.subr.mxu0 0.0
    %1129 = vmatpush2.msra.mxu0 0.0
    %1130 = vmatprep.mubr.f32.mxu0 0.0
    %1131 = vmatmul.mubr.f32.gmra.mxu0 %v1064
    %v1132 = vpop.f32.mrf.mxu0
    %v1133 = vadd.f32 0.0, %v1132
    %v1134 = vpop.f32.mrf.mxu0
    %1135 = vdwg.mxu0
    %1136 = vrot.lane.b32.xlu0 %v181, 64
    %v1137 = vpop.permute.xlu0 %1136
    %v1140 = vsel %vm197, %v903, 0
    %1142 = vmatprep.subr.mxu0 0.0
    %1143 = vmatpush1.msra.mxu0 0.0
    %1144 = vmatprep.subr.mxu0 0.0
    %1145 = vmatpush1.msra.mxu0 0.0
    %1146 = vmatprep.subr.mxu0 0.0
    %1147 = vmatpush1.msra.mxu0 0.0
    %1148 = vmatprep.subr.mxu0 0.0
    %1149 = vmatpush1.msra.mxu0 0.0
    %1150 = vmatprep.subr.mxu0 0.0
    %1151 = vmatpush1.msra.mxu0 0.0
    %1152 = vmatprep.subr.mxu0 0.0
    %1153 = vmatpush1.msra.mxu0 0.0
    %1154 = vmatprep.subr.mxu0 0.0
    %1155 = vmatpush1.msra.mxu0 0.0
    %1156 = vmatprep.subr.mxu0 0.0
    %1157 = vmatpush1.msra.mxu0 0.0
    %1158 = vmatprep.subr.mxu0 0.0
    %1159 = vmatpush1.msra.mxu0 0.0
    %1160 = vmatprep.subr.mxu0 0.0
    %1161 = vmatpush1.msra.mxu0 0.0
    %1162 = vmatprep.subr.mxu0 0.0
    %1163 = vmatpush1.msra.mxu0 0.0
    %1164 = vmatprep.subr.mxu0 0.0
    %1165 = vmatpush1.msra.mxu0 0.0
    %1166 = vmatprep.subr.mxu0 0.0
    %1167 = vmatpush1.msra.mxu0 0.0
    %1168 = vmatprep.subr.mxu0 0.0
    %1169 = vmatpush1.msra.mxu0 0.0
    %1170 = vmatprep.subr.mxu0 0.0
    %1171 = vmatpush1.msra.mxu0 0.0
    %1172 = vmatprep.subr.mxu0 0.0
    %1173 = vmatpush1.msra.mxu0 %v1137
    %1174 = vmatprep.subr.mxu0 0.0
    %1175 = vmatpush2.msra.mxu0 0.0
    %1176 = vmatprep.subr.mxu0 0.0
    %1177 = vmatpush2.msra.mxu0 0.0
    %1178 = vmatprep.subr.mxu0 0.0
    %1179 = vmatpush2.msra.mxu0 0.0
    %1180 = vmatprep.subr.mxu0 0.0
    %1181 = vmatpush2.msra.mxu0 0.0
    %1182 = vmatprep.subr.mxu0 0.0
    %1183 = vmatpush2.msra.mxu0 0.0
    %1184 = vmatprep.subr.mxu0 0.0
    %1185 = vmatpush2.msra.mxu0 0.0
    %1186 = vmatprep.subr.mxu0 0.0
    %1187 = vmatpush2.msra.mxu0 0.0
    %1188 = vmatprep.subr.mxu0 0.0
    %1189 = vmatpush2.msra.mxu0 0.0
    %1190 = vmatprep.subr.mxu0 0.0
    %1191 = vmatpush2.msra.mxu0 0.0
    %1192 = vmatprep.subr.mxu0 0.0
    %1193 = vmatpush2.msra.mxu0 0.0
    %1194 = vmatprep.subr.mxu0 0.0
    %1195 = vmatpush2.msra.mxu0 0.0
    %1196 = vmatprep.subr.mxu0 0.0
    %1197 = vmatpush2.msra.mxu0 0.0
    %1198 = vmatprep.subr.mxu0 0.0
    %1199 = vmatpush2.msra.mxu0 0.0
    %1200 = vmatprep.subr.mxu0 0.0
    %1201 = vmatpush2.msra.mxu0 0.0
    %1202 = vmatprep.subr.mxu0 0.0
    %1203 = vmatpush2.msra.mxu0 0.0
    %1204 = vmatprep.subr.mxu0 0.0
    %1205 = vmatpush2.msra.mxu0 0.0
    %1206 = vmatprep.mubr.f32.mxu0 0.0
    %1207 = vmatmul.mubr.f32.gmra.mxu0 %v1140
    %v1208 = vpop.f32.mrf.mxu0
    %v1209 = vadd.f32 0.0, %v1208
    %v1210 = vpop.f32.mrf.mxu0
    %1211 = vdwg.mxu0
    %1212 = vrot.lane.b32.xlu0 %v172, 64
    %v1213 = vpop.permute.xlu0 %1212
    %v1216 = vsel %vm197, %v904, 0
    %1218 = vmatprep.subr.mxu0 0.0
    %1219 = vmatpush1.msra.mxu0 0.0
    %1220 = vmatprep.subr.mxu0 0.0
    %1221 = vmatpush1.msra.mxu0 0.0
    %1222 = vmatprep.subr.mxu0 0.0
    %1223 = vmatpush1.msra.mxu0 0.0
    %1224 = vmatprep.subr.mxu0 0.0
    %1225 = vmatpush1.msra.mxu0 0.0
    %1226 = vmatprep.subr.mxu0 0.0
    %1227 = vmatpush1.msra.mxu0 0.0
    %1228 = vmatprep.subr.mxu0 0.0
    %1229 = vmatpush1.msra.mxu0 0.0
    %1230 = vmatprep.subr.mxu0 0.0
    %1231 = vmatpush1.msra.mxu0 0.0
    %1232 = vmatprep.subr.mxu0 0.0
    %1233 = vmatpush1.msra.mxu0 0.0
    %1234 = vmatprep.subr.mxu0 0.0
    %1235 = vmatpush1.msra.mxu0 0.0
    %1236 = vmatprep.subr.mxu0 0.0
    %1237 = vmatpush1.msra.mxu0 0.0
    %1238 = vmatprep.subr.mxu0 0.0
    %1239 = vmatpush1.msra.mxu0 0.0
    %1240 = vmatprep.subr.mxu0 0.0
    %1241 = vmatpush1.msra.mxu0 0.0
    %1242 = vmatprep.subr.mxu0 0.0
    %1243 = vmatpush1.msra.mxu0 0.0
    %1244 = vmatprep.subr.mxu0 0.0
    %1245 = vmatpush1.msra.mxu0 0.0
    %1246 = vmatprep.subr.mxu0 0.0
    %1247 = vmatpush1.msra.mxu0 0.0
    %1248 = vmatprep.subr.mxu0 0.0
    %1249 = vmatpush1.msra.mxu0 %v1213
    %1250 = vmatprep.subr.mxu0 0.0
    %1251 = vmatpush2.msra.mxu0 0.0
    %1252 = vmatprep.subr.mxu0 0.0
    %1253 = vmatpush2.msra.mxu0 0.0
    %1254 = vmatprep.subr.mxu0 0.0
    %1255 = vmatpush2.msra.mxu0 0.0
    %1256 = vmatprep.subr.mxu0 0.0
    %1257 = vmatpush2.msra.mxu0 0.0
    %1258 = vmatprep.subr.mxu0 0.0
    %1259 = vmatpush2.msra.mxu0 0.0
    %1260 = vmatprep.subr.mxu0 0.0
    %1261 = vmatpush2.msra.mxu0 0.0
    %1262 = vmatprep.subr.mxu0 0.0
    %1263 = vmatpush2.msra.mxu0 0.0
    %1264 = vmatprep.subr.mxu0 0.0
    %1265 = vmatpush2.msra.mxu0 0.0
    %1266 = vmatprep.subr.mxu0 0.0
    %1267 = vmatpush2.msra.mxu0 0.0
    %1268 = vmatprep.subr.mxu0 0.0
    %1269 = vmatpush2.msra.mxu0 0.0
    %1270 = vmatprep.subr.mxu0 0.0
    %1271 = vmatpush2.msra.mxu0 0.0
    %1272 = vmatprep.subr.mxu0 0.0
    %1273 = vmatpush2.msra.mxu0 0.0
    %1274 = vmatprep.subr.mxu0 0.0
    %1275 = vmatpush2.msra.mxu0 0.0
    %1276 = vmatprep.subr.mxu0 0.0
    %1277 = vmatpush2.msra.mxu0 0.0
    %1278 = vmatprep.subr.mxu0 0.0
    %1279 = vmatpush2.msra.mxu0 0.0
    %1280 = vmatprep.subr.mxu0 0.0
    %1281 = vmatpush2.msra.mxu0 0.0
    %1282 = vmatprep.mubr.f32.mxu0 0.0
    %1283 = vmatmul.mubr.f32.gmra.mxu0 %v1216
    %v1284 = vpop.f32.mrf.mxu0
    %v1285 = vadd.f32 0.0, %v1284
    %v1286 = vpop.f32.mrf.mxu0
    %1287 = vdwg.mxu0
    %1288 = vrot.lane.b32.xlu0 %v184, 64
    %v1289 = vpop.permute.xlu0 %1288
    %v1292 = vsel %vm197, %v905, 0
    %1294 = vmatprep.subr.mxu0 0.0
    %1295 = vmatpush1.msra.mxu0 0.0
    %1296 = vmatprep.subr.mxu0 0.0
    %1297 = vmatpush1.msra.mxu0 0.0
    %1298 = vmatprep.subr.mxu0 0.0
    %1299 = vmatpush1.msra.mxu0 0.0
    %1300 = vmatprep.subr.mxu0 0.0
    %1301 = vmatpush1.msra.mxu0 0.0
    %1302 = vmatprep.subr.mxu0 0.0
    %1303 = vmatpush1.msra.mxu0 0.0
    %1304 = vmatprep.subr.mxu0 0.0
    %1305 = vmatpush1.msra.mxu0 0.0
    %1306 = vmatprep.subr.mxu0 0.0
    %1307 = vmatpush1.msra.mxu0 0.0
    %1308 = vmatprep.subr.mxu0 0.0
    %1309 = vmatpush1.msra.mxu0 0.0
    %1310 = vmatprep.subr.mxu0 0.0
    %1311 = vmatpush1.msra.mxu0 0.0
    %1312 = vmatprep.subr.mxu0 0.0
    %1313 = vmatpush1.msra.mxu0 0.0
    %1314 = vmatprep.subr.mxu0 0.0
    %1315 = vmatpush1.msra.mxu0 0.0
    %1316 = vmatprep.subr.mxu0 0.0
    %1317 = vmatpush1.msra.mxu0 0.0
    %1318 = vmatprep.subr.mxu0 0.0
    %1319 = vmatpush1.msra.mxu0 0.0
    %1320 = vmatprep.subr.mxu0 0.0
    %1321 = vmatpush1.msra.mxu0 0.0
    %1322 = vmatprep.subr.mxu0 0.0
    %1323 = vmatpush1.msra.mxu0 0.0
    %1324 = vmatprep.subr.mxu0 0.0
    %1325 = vmatpush1.msra.mxu0 %v1289
    %1326 = vmatprep.subr.mxu0 0.0
    %1327 = vmatpush2.msra.mxu0 0.0
    %1328 = vmatprep.subr.mxu0 0.0
    %1329 = vmatpush2.msra.mxu0 0.0
    %1330 = vmatprep.subr.mxu0 0.0
    %1331 = vmatpush2.msra.mxu0 0.0
    %1332 = vmatprep.subr.mxu0 0.0
    %1333 = vmatpush2.msra.mxu0 0.0
    %1334 = vmatprep.subr.mxu0 0.0
    %1335 = vmatpush2.msra.mxu0 0.0
    %1336 = vmatprep.subr.mxu0 0.0
    %1337 = vmatpush2.msra.mxu0 0.0
    %1338 = vmatprep.subr.mxu0 0.0
    %1339 = vmatpush2.msra.mxu0 0.0
    %1340 = vmatprep.subr.mxu0 0.0
    %1341 = vmatpush2.msra.mxu0 0.0
    %1342 = vmatprep.subr.mxu0 0.0
    %1343 = vmatpush2.msra.mxu0 0.0
    %1344 = vmatprep.subr.mxu0 0.0
    %1345 = vmatpush2.msra.mxu0 0.0
    %1346 = vmatprep.subr.mxu0 0.0
    %1347 = vmatpush2.msra.mxu0 0.0
    %1348 = vmatprep.subr.mxu0 0.0
    %1349 = vmatpush2.msra.mxu0 0.0
    %1350 = vmatprep.subr.mxu0 0.0
    %1351 = vmatpush2.msra.mxu0 0.0
    %1352 = vmatprep.subr.mxu0 0.0
    %1353 = vmatpush2.msra.mxu0 0.0
    %1354 = vmatprep.subr.mxu0 0.0
    %1355 = vmatpush2.msra.mxu0 0.0
    %1356 = vmatprep.subr.mxu0 0.0
    %1357 = vmatpush2.msra.mxu0 0.0
    %1358 = vmatprep.mubr.f32.mxu0 0.0
    %1359 = vmatmul.mubr.f32.gmra.mxu0 %v1292
    %v1360 = vpop.f32.mrf.mxu0
    %v1361 = vadd.f32 0.0, %v1360
    %v1362 = vpop.f32.mrf.mxu0
    %1363 = vdwg.mxu0
    %1364 = vrot.lane.b32.xlu0 %v186, 64
    %v1365 = vpop.permute.xlu0 %1364
    %v1368 = vsel %vm197, %v906, 0
    %1370 = vmatprep.subr.mxu0 0.0
    %1371 = vmatpush1.msra.mxu0 0.0
    %1372 = vmatprep.subr.mxu0 0.0
    %1373 = vmatpush1.msra.mxu0 0.0
    %1374 = vmatprep.subr.mxu0 0.0
    %1375 = vmatpush1.msra.mxu0 0.0
    %1376 = vmatprep.subr.mxu0 0.0
    %1377 = vmatpush1.msra.mxu0 0.0
    %1378 = vmatprep.subr.mxu0 0.0
    %1379 = vmatpush1.msra.mxu0 0.0
    %1380 = vmatprep.subr.mxu0 0.0
    %1381 = vmatpush1.msra.mxu0 0.0
    %1382 = vmatprep.subr.mxu0 0.0
    %1383 = vmatpush1.msra.mxu0 0.0
    %1384 = vmatprep.subr.mxu0 0.0
    %1385 = vmatpush1.msra.mxu0 0.0
    %1386 = vmatprep.subr.mxu0 0.0
    %1387 = vmatpush1.msra.mxu0 0.0
    %1388 = vmatprep.subr.mxu0 0.0
    %1389 = vmatpush1.msra.mxu0 0.0
    %1390 = vmatprep.subr.mxu0 0.0
    %1391 = vmatpush1.msra.mxu0 0.0
    %1392 = vmatprep.subr.mxu0 0.0
    %1393 = vmatpush1.msra.mxu0 0.0
    %1394 = vmatprep.subr.mxu0 0.0
    %1395 = vmatpush1.msra.mxu0 0.0
    %1396 = vmatprep.subr.mxu0 0.0
    %1397 = vmatpush1.msra.mxu0 0.0
    %1398 = vmatprep.subr.mxu0 0.0
    %1399 = vmatpush1.msra.mxu0 0.0
    %1400 = vmatprep.subr.mxu0 0.0
    %1401 = vmatpush1.msra.mxu0 %v1365
    %1402 = vmatprep.subr.mxu0 0.0
    %1403 = vmatpush2.msra.mxu0 0.0
    %1404 = vmatprep.subr.mxu0 0.0
    %1405 = vmatpush2.msra.mxu0 0.0
    %1406 = vmatprep.subr.mxu0 0.0
    %1407 = vmatpush2.msra.mxu0 0.0
    %1408 = vmatprep.subr.mxu0 0.0
    %1409 = vmatpush2.msra.mxu0 0.0
    %1410 = vmatprep.subr.mxu0 0.0
    %1411 = vmatpush2.msra.mxu0 0.0
    %1412 = vmatprep.subr.mxu0 0.0
    %1413 = vmatpush2.msra.mxu0 0.0
    %1414 = vmatprep.subr.mxu0 0.0
    %1415 = vmatpush2.msra.mxu0 0.0
    %1416 = vmatprep.subr.mxu0 0.0
    %1417 = vmatpush2.msra.mxu0 0.0
    %1418 = vmatprep.subr.mxu0 0.0
    %1419 = vmatpush2.msra.mxu0 0.0
    %1420 = vmatprep.subr.mxu0 0.0
    %1421 = vmatpush2.msra.mxu0 0.0
    %1422 = vmatprep.subr.mxu0 0.0
    %1423 = vmatpush2.msra.mxu0 0.0
    %1424 = vmatprep.subr.mxu0 0.0
    %1425 = vmatpush2.msra.mxu0 0.0
    %1426 = vmatprep.subr.mxu0 0.0
    %1427 = vmatpush2.msra.mxu0 0.0
    %1428 = vmatprep.subr.mxu0 0.0
    %1429 = vmatpush2.msra.mxu0 0.0
    %1430 = vmatprep.subr.mxu0 0.0
    %1431 = vmatpush2.msra.mxu0 0.0
    %1432 = vmatprep.subr.mxu0 0.0
    %1433 = vmatpush2.msra.mxu0 0.0
    %1434 = vmatprep.mubr.f32.mxu0 0.0
    %1435 = vmatmul.mubr.f32.gmra.mxu0 %v1368
    %v1436 = vpop.f32.mrf.mxu0
    %v1437 = vadd.f32 0.0, %v1436
    %v1438 = vpop.f32.mrf.mxu0
    %1439 = vdwg.mxu0
    %1440 = vrot.lane.b32.xlu0 %v188, 64
    %v1441 = vpop.permute.xlu0 %1440
    %v1444 = vsel %vm197, %v907, 0
    %1446 = vmatprep.subr.mxu0 0.0
    %1447 = vmatpush1.msra.mxu0 0.0
    %1448 = vmatprep.subr.mxu0 0.0
    %1449 = vmatpush1.msra.mxu0 0.0
    %1450 = vmatprep.subr.mxu0 0.0
    %1451 = vmatpush1.msra.mxu0 0.0
    %1452 = vmatprep.subr.mxu0 0.0
    %1453 = vmatpush1.msra.mxu0 0.0
    %1454 = vmatprep.subr.mxu0 0.0
    %1455 = vmatpush1.msra.mxu0 0.0
    %1456 = vmatprep.subr.mxu0 0.0
    %1457 = vmatpush1.msra.mxu0 0.0
    %1458 = vmatprep.subr.mxu0 0.0
    %1459 = vmatpush1.msra.mxu0 0.0
    %1460 = vmatprep.subr.mxu0 0.0
    %1461 = vmatpush1.msra.mxu0 0.0
    %1462 = vmatprep.subr.mxu0 0.0
    %1463 = vmatpush1.msra.mxu0 0.0
    %1464 = vmatprep.subr.mxu0 0.0
    %1465 = vmatpush1.msra.mxu0 0.0
    %1466 = vmatprep.subr.mxu0 0.0
    %1467 = vmatpush1.msra.mxu0 0.0
    %1468 = vmatprep.subr.mxu0 0.0
    %1469 = vmatpush1.msra.mxu0 0.0
    %1470 = vmatprep.subr.mxu0 0.0
    %1471 = vmatpush1.msra.mxu0 0.0
    %1472 = vmatprep.subr.mxu0 0.0
    %1473 = vmatpush1.msra.mxu0 0.0
    %1474 = vmatprep.subr.mxu0 0.0
    %1475 = vmatpush1.msra.mxu0 0.0
    %1476 = vmatprep.subr.mxu0 0.0
    %1477 = vmatpush1.msra.mxu0 %v1441
    %1478 = vmatprep.subr.mxu0 0.0
    %1479 = vmatpush2.msra.mxu0 0.0
    %1480 = vmatprep.subr.mxu0 0.0
    %1481 = vmatpush2.msra.mxu0 0.0
    %1482 = vmatprep.subr.mxu0 0.0
    %1483 = vmatpush2.msra.mxu0 0.0
    %1484 = vmatprep.subr.mxu0 0.0
    %1485 = vmatpush2.msra.mxu0 0.0
    %1486 = vmatprep.subr.mxu0 0.0
    %1487 = vmatpush2.msra.mxu0 0.0
    %1488 = vmatprep.subr.mxu0 0.0
    %1489 = vmatpush2.msra.mxu0 0.0
    %1490 = vmatprep.subr.mxu0 0.0
    %1491 = vmatpush2.msra.mxu0 0.0
    %1492 = vmatprep.subr.mxu0 0.0
    %1493 = vmatpush2.msra.mxu0 0.0
    %1494 = vmatprep.subr.mxu0 0.0
    %1495 = vmatpush2.msra.mxu0 0.0
    %1496 = vmatprep.subr.mxu0 0.0
    %1497 = vmatpush2.msra.mxu0 0.0
    %1498 = vmatprep.subr.mxu0 0.0
    %1499 = vmatpush2.msra.mxu0 0.0
    %1500 = vmatprep.subr.mxu0 0.0
    %1501 = vmatpush2.msra.mxu0 0.0
    %1502 = vmatprep.subr.mxu0 0.0
    %1503 = vmatpush2.msra.mxu0 0.0
    %1504 = vmatprep.subr.mxu0 0.0
    %1505 = vmatpush2.msra.mxu0 0.0
    %1506 = vmatprep.subr.mxu0 0.0
    %1507 = vmatpush2.msra.mxu0 0.0
    %1508 = vmatprep.subr.mxu0 0.0
    %1509 = vmatpush2.msra.mxu0 0.0
    %1510 = vmatprep.mubr.f32.mxu0 0.0
    %1511 = vmatmul.mubr.f32.gmra.mxu0 %v1444
    %v1512 = vpop.f32.mrf.mxu0
    %v1513 = vadd.f32 0.0, %v1512
    %v1514 = vpop.f32.mrf.mxu0
    %1515 = vdwg.mxu0
    %v1516 = vld [vmem:[%s6] sm:$0xff]
    %v1517 = vld [vmem:[%s6 + $0x8] sm:$0xff]
    %v1518 = vld [vmem:[%s6 + $0x10] sm:$0xff]
    %v1519 = vld [vmem:[%s6 + $0x18] sm:$0xff]
    %v1521 = vsel %vm197, %v1057, 0
    %v1524 = vsel %vm197, %v1361, 0
    %1526 = vmatprep.subr.mxu0 0.0
    %1527 = vmatpush1.msra.mxu0 0.0
    %1528 = vmatprep.subr.mxu0 0.0
    %1529 = vmatpush1.msra.mxu0 0.0
    %1530 = vmatprep.subr.mxu0 0.0
    %1531 = vmatpush1.msra.mxu0 0.0
    %1532 = vmatprep.subr.mxu0 0.0
    %1533 = vmatpush1.msra.mxu0 0.0
    %1534 = vmatprep.subr.mxu0 0.0
    %1535 = vmatpush1.msra.mxu0 0.0
    %1536 = vmatprep.subr.mxu0 0.0
    %1537 = vmatpush1.msra.mxu0 0.0
    %1538 = vmatprep.subr.mxu0 0.0
    %1539 = vmatpush1.msra.mxu0 0.0
    %1540 = vmatprep.subr.mxu0 0.0
    %1541 = vmatpush1.msra.mxu0 0.0
    %1542 = vmatprep.subr.mxu0 0.0
    %1543 = vmatpush1.msra.mxu0 0.0
    %1544 = vmatprep.subr.mxu0 0.0
    %1545 = vmatpush1.msra.mxu0 0.0
    %1546 = vmatprep.subr.mxu0 0.0
    %1547 = vmatpush1.msra.mxu0 0.0
    %1548 = vmatprep.subr.mxu0 0.0
    %1549 = vmatpush1.msra.mxu0 0.0
    %1550 = vmatprep.subr.mxu0 0.0
    %1551 = vmatpush1.msra.mxu0 0.0
    %1552 = vmatprep.subr.mxu0 0.0
    %1553 = vmatpush1.msra.mxu0 0.0
    %1554 = vmatprep.subr.mxu0 0.0
    %1555 = vmatpush1.msra.mxu0 0.0
    %1556 = vmatprep.subr.mxu0 0.0
    %1557 = vmatpush1.msra.mxu0 %v1517
    %1558 = vmatprep.subr.mxu0 0.0
    %1559 = vmatpush2.msra.mxu0 0.0
    %1560 = vmatprep.subr.mxu0 0.0
    %1561 = vmatpush2.msra.mxu0 0.0
    %1562 = vmatprep.subr.mxu0 0.0
    %1563 = vmatpush2.msra.mxu0 0.0
    %1564 = vmatprep.subr.mxu0 0.0
    %1565 = vmatpush2.msra.mxu0 0.0
    %1566 = vmatprep.subr.mxu0 0.0
    %1567 = vmatpush2.msra.mxu0 0.0
    %1568 = vmatprep.subr.mxu0 0.0
    %1569 = vmatpush2.msra.mxu0 0.0
    %1570 = vmatprep.subr.mxu0 0.0
    %1571 = vmatpush2.msra.mxu0 0.0
    %1572 = vmatprep.subr.mxu0 0.0
    %1573 = vmatpush2.msra.mxu0 0.0
    %1574 = vmatprep.subr.mxu0 0.0
    %1575 = vmatpush2.msra.mxu0 0.0
    %1576 = vmatprep.subr.mxu0 0.0
    %1577 = vmatpush2.msra.mxu0 0.0
    %1578 = vmatprep.subr.mxu0 0.0
    %1579 = vmatpush2.msra.mxu0 0.0
    %1580 = vmatprep.subr.mxu0 0.0
    %1581 = vmatpush2.msra.mxu0 0.0
    %1582 = vmatprep.subr.mxu0 0.0
    %1583 = vmatpush2.msra.mxu0 0.0
    %1584 = vmatprep.subr.mxu0 0.0
    %1585 = vmatpush2.msra.mxu0 0.0
    %1586 = vmatprep.subr.mxu0 0.0
    %1587 = vmatpush2.msra.mxu0 0.0
    %1588 = vmatprep.subr.mxu0 0.0
    %1589 = vmatpush2.msra.mxu0 0.0
    %1590 = vmatprep.mubr.f32.mxu0 0.0
    %1591 = vmatmul.mubr.f32.gmra.mxu0 %v1521
    %v1592 = vpop.f32.mrf.mxu0
    %v1593 = vadd.f32 0.0, %v1592
    %v1594 = vpop.f32.mrf.mxu0
    %1595 = vmatprep.mubr.f32.mxu0 0.0
    %1596 = vmatmul.mubr.f32.gmra.mxu0 %v1524
    %v1597 = vpop.f32.mrf.mxu0
    %v1598 = vadd.f32 0.0, %v1597
    %v1599 = vpop.f32.mrf.mxu0
    %1600 = vdwg.mxu0
    %v1602 = vsel %vm197, %v981, 0
    %v1605 = vsel %vm197, %v1285, 0
    %1607 = vmatprep.subr.mxu0 0.0
    %1608 = vmatpush1.msra.mxu0 0.0
    %1609 = vmatprep.subr.mxu0 0.0
    %1610 = vmatpush1.msra.mxu0 0.0
    %1611 = vmatprep.subr.mxu0 0.0
    %1612 = vmatpush1.msra.mxu0 0.0
    %1613 = vmatprep.subr.mxu0 0.0
    %1614 = vmatpush1.msra.mxu0 0.0
    %1615 = vmatprep.subr.mxu0 0.0
    %1616 = vmatpush1.msra.mxu0 0.0
    %1617 = vmatprep.subr.mxu0 0.0
    %1618 = vmatpush1.msra.mxu0 0.0
    %1619 = vmatprep.subr.mxu0 0.0
    %1620 = vmatpush1.msra.mxu0 0.0
    %1621 = vmatprep.subr.mxu0 0.0
    %1622 = vmatpush1.msra.mxu0 0.0
    %1623 = vmatprep.subr.mxu0 0.0
    %1624 = vmatpush1.msra.mxu0 0.0
    %1625 = vmatprep.subr.mxu0 0.0
    %1626 = vmatpush1.msra.mxu0 0.0
    %1627 = vmatprep.subr.mxu0 0.0
    %1628 = vmatpush1.msra.mxu0 0.0
    %1629 = vmatprep.subr.mxu0 0.0
    %1630 = vmatpush1.msra.mxu0 0.0
    %1631 = vmatprep.subr.mxu0 0.0
    %1632 = vmatpush1.msra.mxu0 0.0
    %1633 = vmatprep.subr.mxu0 0.0
    %1634 = vmatpush1.msra.mxu0 0.0
    %1635 = vmatprep.subr.mxu0 0.0
    %1636 = vmatpush1.msra.mxu0 0.0
    %1637 = vmatprep.subr.mxu0 0.0
    %1638 = vmatpush1.msra.mxu0 %v1516
    %1639 = vmatprep.subr.mxu0 0.0
    %1640 = vmatpush2.msra.mxu0 0.0
    %1641 = vmatprep.subr.mxu0 0.0
    %1642 = vmatpush2.msra.mxu0 0.0
    %1643 = vmatprep.subr.mxu0 0.0
    %1644 = vmatpush2.msra.mxu0 0.0
    %1645 = vmatprep.subr.mxu0 0.0
    %1646 = vmatpush2.msra.mxu0 0.0
    %1647 = vmatprep.subr.mxu0 0.0
    %1648 = vmatpush2.msra.mxu0 0.0
    %1649 = vmatprep.subr.mxu0 0.0
    %1650 = vmatpush2.msra.mxu0 0.0
    %1651 = vmatprep.subr.mxu0 0.0
    %1652 = vmatpush2.msra.mxu0 0.0
    %1653 = vmatprep.subr.mxu0 0.0
    %1654 = vmatpush2.msra.mxu0 0.0
    %1655 = vmatprep.subr.mxu0 0.0
    %1656 = vmatpush2.msra.mxu0 0.0
    %1657 = vmatprep.subr.mxu0 0.0
    %1658 = vmatpush2.msra.mxu0 0.0
    %1659 = vmatprep.subr.mxu0 0.0
    %1660 = vmatpush2.msra.mxu0 0.0
    %1661 = vmatprep.subr.mxu0 0.0
    %1662 = vmatpush2.msra.mxu0 0.0
    %1663 = vmatprep.subr.mxu0 0.0
    %1664 = vmatpush2.msra.mxu0 0.0
    %1665 = vmatprep.subr.mxu0 0.0
    %1666 = vmatpush2.msra.mxu0 0.0
    %1667 = vmatprep.subr.mxu0 0.0
    %1668 = vmatpush2.msra.mxu0 0.0
    %1669 = vmatprep.subr.mxu0 0.0
    %1670 = vmatpush2.msra.mxu0 0.0
    %1671 = vmatprep.mubr.f32.mxu0 0.0
    %1672 = vmatmul.mubr.f32.gmra.mxu0 %v1602
    %v1673 = vpop.f32.mrf.mxu0
    %v1674 = vadd.f32 %v1593, %v1673
    %v1675 = vpop.f32.mrf.mxu0
    %1676 = vmatprep.mubr.f32.mxu0 0.0
    %1677 = vmatmul.mubr.f32.gmra.mxu0 %v1605
    %v1678 = vpop.f32.mrf.mxu0
    %v1679 = vadd.f32 %v1598, %v1678
    %v1680 = vpop.f32.mrf.mxu0
    %1681 = vdwg.mxu0
    %v1683 = vsel %vm197, %v1133, 0
    %v1686 = vsel %vm197, %v1437, 0
    %1688 = vmatprep.subr.mxu0 0.0
    %1689 = vmatpush1.msra.mxu0 0.0
    %1690 = vmatprep.subr.mxu0 0.0
    %1691 = vmatpush1.msra.mxu0 0.0
    %1692 = vmatprep.subr.mxu0 0.0
    %1693 = vmatpush1.msra.mxu0 0.0
    %1694 = vmatprep.subr.mxu0 0.0
    %1695 = vmatpush1.msra.mxu0 0.0
    %1696 = vmatprep.subr.mxu0 0.0
    %1697 = vmatpush1.msra.mxu0 0.0
    %1698 = vmatprep.subr.mxu0 0.0
    %1699 = vmatpush1.msra.mxu0 0.0
    %1700 = vmatprep.subr.mxu0 0.0
    %1701 = vmatpush1.msra.mxu0 0.0
    %1702 = vmatprep.subr.mxu0 0.0
    %1703 = vmatpush1.msra.mxu0 0.0
    %1704 = vmatprep.subr.mxu0 0.0
    %1705 = vmatpush1.msra.mxu0 0.0
    %1706 = vmatprep.subr.mxu0 0.0
    %1707 = vmatpush1.msra.mxu0 0.0
    %1708 = vmatprep.subr.mxu0 0.0
    %1709 = vmatpush1.msra.mxu0 0.0
    %1710 = vmatprep.subr.mxu0 0.0
    %1711 = vmatpush1.msra.mxu0 0.0
    %1712 = vmatprep.subr.mxu0 0.0
    %1713 = vmatpush1.msra.mxu0 0.0
    %1714 = vmatprep.subr.mxu0 0.0
    %1715 = vmatpush1.msra.mxu0 0.0
    %1716 = vmatprep.subr.mxu0 0.0
    %1717 = vmatpush1.msra.mxu0 0.0
    %1718 = vmatprep.subr.mxu0 0.0
    %1719 = vmatpush1.msra.mxu0 %v1518
    %1720 = vmatprep.subr.mxu0 0.0
    %1721 = vmatpush2.msra.mxu0 0.0
    %1722 = vmatprep.subr.mxu0 0.0
    %1723 = vmatpush2.msra.mxu0 0.0
    %1724 = vmatprep.subr.mxu0 0.0
    %1725 = vmatpush2.msra.mxu0 0.0
    %1726 = vmatprep.subr.mxu0 0.0
    %1727 = vmatpush2.msra.mxu0 0.0
    %1728 = vmatprep.subr.mxu0 0.0
    %1729 = vmatpush2.msra.mxu0 0.0
    %1730 = vmatprep.subr.mxu0 0.0
    %1731 = vmatpush2.msra.mxu0 0.0
    %1732 = vmatprep.subr.mxu0 0.0
    %1733 = vmatpush2.msra.mxu0 0.0
    %1734 = vmatprep.subr.mxu0 0.0
    %1735 = vmatpush2.msra.mxu0 0.0
    %1736 = vmatprep.subr.mxu0 0.0
    %1737 = vmatpush2.msra.mxu0 0.0
    %1738 = vmatprep.subr.mxu0 0.0
    %1739 = vmatpush2.msra.mxu0 0.0
    %1740 = vmatprep.subr.mxu0 0.0
    %1741 = vmatpush2.msra.mxu0 0.0
    %1742 = vmatprep.subr.mxu0 0.0
    %1743 = vmatpush2.msra.mxu0 0.0
    %1744 = vmatprep.subr.mxu0 0.0
    %1745 = vmatpush2.msra.mxu0 0.0
    %1746 = vmatprep.subr.mxu0 0.0
    %1747 = vmatpush2.msra.mxu0 0.0
    %1748 = vmatprep.subr.mxu0 0.0
    %1749 = vmatpush2.msra.mxu0 0.0
    %1750 = vmatprep.subr.mxu0 0.0
    %1751 = vmatpush2.msra.mxu0 0.0
    %1752 = vmatprep.mubr.f32.mxu0 0.0
    %1753 = vmatmul.mubr.f32.gmra.mxu0 %v1683
    %v1754 = vpop.f32.mrf.mxu0
    %v1755 = vadd.f32 0.0, %v1754
    %v1756 = vpop.f32.mrf.mxu0
    %1757 = vmatprep.mubr.f32.mxu0 0.0
    %1758 = vmatmul.mubr.f32.gmra.mxu0 %v1686
    %v1759 = vpop.f32.mrf.mxu0
    %v1760 = vadd.f32 0.0, %v1759
    %v1761 = vpop.f32.mrf.mxu0
    %1762 = vdwg.mxu0
    %v1763 = vadd.f32 %v1674, %v1755
    %v1764 = vadd.f32 %v1679, %v1760
    %v1766 = vsel %vm197, %v1209, 0
    %v1769 = vsel %vm197, %v1513, 0
    %1771 = vmatprep.subr.mxu0 0.0
    %1772 = vmatpush1.msra.mxu0 0.0
    %1773 = vmatprep.subr.mxu0 0.0
    %1774 = vmatpush1.msra.mxu0 0.0
    %1775 = vmatprep.subr.mxu0 0.0
    %1776 = vmatpush1.msra.mxu0 0.0
    %1777 = vmatprep.subr.mxu0 0.0
    %1778 = vmatpush1.msra.mxu0 0.0
    %1779 = vmatprep.subr.mxu0 0.0
    %1780 = vmatpush1.msra.mxu0 0.0
    %1781 = vmatprep.subr.mxu0 0.0
    %1782 = vmatpush1.msra.mxu0 0.0
    %1783 = vmatprep.subr.mxu0 0.0
    %1784 = vmatpush1.msra.mxu0 0.0
    %1785 = vmatprep.subr.mxu0 0.0
    %1786 = vmatpush1.msra.mxu0 0.0
    %1787 = vmatprep.subr.mxu0 0.0
    %1788 = vmatpush1.msra.mxu0 0.0
    %1789 = vmatprep.subr.mxu0 0.0
    %1790 = vmatpush1.msra.mxu0 0.0
    %1791 = vmatprep.subr.mxu0 0.0
    %1792 = vmatpush1.msra.mxu0 0.0
    %1793 = vmatprep.subr.mxu0 0.0
    %1794 = vmatpush1.msra.mxu0 0.0
    %1795 = vmatprep.subr.mxu0 0.0
    %1796 = vmatpush1.msra.mxu0 0.0
    %1797 = vmatprep.subr.mxu0 0.0
    %1798 = vmatpush1.msra.mxu0 0.0
    %1799 = vmatprep.subr.mxu0 0.0
    %1800 = vmatpush1.msra.mxu0 0.0
    %1801 = vmatprep.subr.mxu0 0.0
    %1802 = vmatpush1.msra.mxu0 %v1519
    %1803 = vmatprep.subr.mxu0 0.0
    %1804 = vmatpush2.msra.mxu0 0.0
    %1805 = vmatprep.subr.mxu0 0.0
    %1806 = vmatpush2.msra.mxu0 0.0
    %1807 = vmatprep.subr.mxu0 0.0
    %1808 = vmatpush2.msra.mxu0 0.0
    %1809 = vmatprep.subr.mxu0 0.0
    %1810 = vmatpush2.msra.mxu0 0.0
    %1811 = vmatprep.subr.mxu0 0.0
    %1812 = vmatpush2.msra.mxu0 0.0
    %1813 = vmatprep.subr.mxu0 0.0
    %1814 = vmatpush2.msra.mxu0 0.0
    %1815 = vmatprep.subr.mxu0 0.0
    %1816 = vmatpush2.msra.mxu0 0.0
    %1817 = vmatprep.subr.mxu0 0.0
    %1818 = vmatpush2.msra.mxu0 0.0
    %1819 = vmatprep.subr.mxu0 0.0
    %1820 = vmatpush2.msra.mxu0 0.0
    %1821 = vmatprep.subr.mxu0 0.0
    %1822 = vmatpush2.msra.mxu0 0.0
    %1823 = vmatprep.subr.mxu0 0.0
    %1824 = vmatpush2.msra.mxu0 0.0
    %1825 = vmatprep.subr.mxu0 0.0
    %1826 = vmatpush2.msra.mxu0 0.0
    %1827 = vmatprep.subr.mxu0 0.0
    %1828 = vmatpush2.msra.mxu0 0.0
    %1829 = vmatprep.subr.mxu0 0.0
    %1830 = vmatpush2.msra.mxu0 0.0
    %1831 = vmatprep.subr.mxu0 0.0
    %1832 = vmatpush2.msra.mxu0 0.0
    %1833 = vmatprep.subr.mxu0 0.0
    %1834 = vmatpush2.msra.mxu0 0.0
    %1835 = vmatprep.mubr.f32.mxu0 0.0
    %1836 = vmatmul.mubr.f32.gmra.mxu0 %v1766
    %v1837 = vpop.f32.mrf.mxu0
    %v1838 = vadd.f32 0.0, %v1837
    %v1839 = vpop.f32.mrf.mxu0
    %1840 = vmatprep.mubr.f32.mxu0 0.0
    %1841 = vmatmul.mubr.f32.gmra.mxu0 %v1769
    %v1842 = vpop.f32.mrf.mxu0
    %v1843 = vadd.f32 0.0, %v1842
    %v1844 = vpop.f32.mrf.mxu0
    %1845 = vdwg.mxu0
    %v1846 = vadd.f32 %v1763, %v1838
    %v1847 = vadd.f32 %v1764, %v1843
    %v1848 = vld [vmem:[%s7] sm:$0x1]
    %v1850 = vlaneseq
    %v1851 = vshrl.u32 %v1850, 7
    %v1852 = vsub.s32 0, %v1851
    %v1853 = vrot.slane %v1848, %v1852
    %v1855 = vadd.f32 %v1846, %v1853
    %v1856 = vadd.f32 %v1847, %v1853
    %v1857 = vadd.f32 %v42, %v1855
    %v1858 = vadd.f32 %v43, %v1856
    %v1859 = vld [vmem:[%s3] sm:$0x1]
    %v1860 = vld [vmem:[%s4] sm:$0x1]
    %v1861 = vsel %vm46, %v1857, 0.0
    %1862 = vadd.xlane.f32.xlu0 %v1861
    %v1863 = vpop.xlane.xlu0 %1862
    %v1864 = vsel %vm46, %v1858, 0.0
    %1865 = vadd.xlane.f32.xlu0 %v1864
    %v1866 = vpop.xlane.xlu0 %1865
    %v1867 = vmul.f32 %v1863, %v53
    %v1868 = vmul.f32 %v1866, %v53
    %v1869 = vsub.f32 %v1857, %v1867
    %v1870 = vsub.f32 %v1858, %v1868
    %v1871 = vmul.f32 %v1869, %v1869
    %v1872 = vmul.f32 %v1870, %v1870
    %v1873 = vsel %vm46, %v1871, 0.0
    %1874 = vadd.xlane.f32.xlu0 %v1873
    %v1875 = vpop.xlane.xlu0 %1874
    %v1876 = vsel %vm46, %v1872, 0.0
    %1877 = vadd.xlane.f32.xlu0 %v1876
    %v1878 = vpop.xlane.xlu0 %1877
    %v1879 = vmul.f32 %v1875, %v53
    %v1880 = vmul.f32 %v1878, %v53
    %v1881 = vadd.f32 %v1879, 1e-05
    %v1882 = vadd.f32 %v1880, 1e-05
    %v1883 = vrsqrt.pop %v1881
    %v1884 = vrsqrt.pop %v1882
    %v1885 = vmul.f32 %v1869, %v1883
    %v1886 = vmul.f32 %v1870, %v1884
    %v1888 = vlaneseq
    %v1889 = vshrl.u32 %v1888, 7
    %v1890 = vsub.s32 0, %v1889
    %v1891 = vrot.slane %v1859, %v1890
    %v1893 = vmul.f32 %v1885, %v1891
    %v1894 = vmul.f32 %v1886, %v1891
    %v1896 = vlaneseq
    %v1897 = vshrl.u32 %v1896, 7
    %v1898 = vsub.s32 0, %v1897
    %v1899 = vrot.slane %v1860, %v1898
    %v1901 = vadd.f32 %v1893, %v1899
    %v1902 = vadd.f32 %v1894, %v1899
    %v1903 = vld [vmem:[%s8] sm:$0xff]
    %v1904 = vld [vmem:[%s8 + $0x8] sm:$0xff]
    %v1905 = vld [vmem:[%s8 + $0x10] sm:$0xff]
    %v1906 = vld [vmem:[%s8 + $0x18] sm:$0xff]
    %v1907 = vld [vmem:[%s9] sm:$0x1]
    %v1909 = vlaneseq
    %v1910 = vshrl.u32 %v1909, 7
    %v1911 = vsub.s32 0, %v1910
    %v1912 = vrot.slane %v1907, %v1911
    %v1915 = vsel %vm46, %v1901, 0
    %v1918 = vsel %vm46, %v1902, 0
    %1920 = vmatprep.subr.mxu0 0.0
    %1921 = vmatpush1.msra.mxu0 0.0
    %1922 = vmatprep.subr.mxu0 0.0
    %1923 = vmatpush1.msra.mxu0 0.0
    %1924 = vmatprep.subr.mxu0 0.0
    %1925 = vmatpush1.msra.mxu0 0.0
    %1926 = vmatprep.subr.mxu0 0.0
    %1927 = vmatpush1.msra.mxu0 0.0
    %1928 = vmatprep.subr.mxu0 0.0
    %1929 = vmatpush1.msra.mxu0 0.0
    %1930 = vmatprep.subr.mxu0 0.0
    %1931 = vmatpush1.msra.mxu0 0.0
    %1932 = vmatprep.subr.mxu0 0.0
    %1933 = vmatpush1.msra.mxu0 0.0
    %1934 = vmatprep.subr.mxu0 0.0
    %1935 = vmatpush1.msra.mxu0 0.0
    %1936 = vmatprep.subr.mxu0 0.0
    %1937 = vmatpush1.msra.mxu0 0.0
    %1938 = vmatprep.subr.mxu0 0.0
    %1939 = vmatpush1.msra.mxu0 0.0
    %1940 = vmatprep.subr.mxu0 0.0
    %1941 = vmatpush1.msra.mxu0 0.0
    %1942 = vmatprep.subr.mxu0 0.0
    %1943 = vmatpush1.msra.mxu0 0.0
    %1944 = vmatprep.subr.mxu0 0.0
    %1945 = vmatpush1.msra.mxu0 %v1906
    %1946 = vmatprep.subr.mxu0 0.0
    %1947 = vmatpush1.msra.mxu0 %v1905
    %1948 = vmatprep.subr.mxu0 0.0
    %1949 = vmatpush1.msra.mxu0 %v1904
    %1950 = vmatprep.subr.mxu0 0.0
    %1951 = vmatpush1.msra.mxu0 %v1903
    %1952 = vmatprep.subr.mxu0 0.0
    %1953 = vmatpush2.msra.mxu0 0.0
    %1954 = vmatprep.subr.mxu0 0.0
    %1955 = vmatpush2.msra.mxu0 0.0
    %1956 = vmatprep.subr.mxu0 0.0
    %1957 = vmatpush2.msra.mxu0 0.0
    %1958 = vmatprep.subr.mxu0 0.0
    %1959 = vmatpush2.msra.mxu0 0.0
    %1960 = vmatprep.subr.mxu0 0.0
    %1961 = vmatpush2.msra.mxu0 0.0
    %1962 = vmatprep.subr.mxu0 0.0
    %1963 = vmatpush2.msra.mxu0 0.0
    %1964 = vmatprep.subr.mxu0 0.0
    %1965 = vmatpush2.msra.mxu0 0.0
    %1966 = vmatprep.subr.mxu0 0.0
    %1967 = vmatpush2.msra.mxu0 0.0
    %1968 = vmatprep.subr.mxu0 0.0
    %1969 = vmatpush2.msra.mxu0 0.0
    %1970 = vmatprep.subr.mxu0 0.0
    %1971 = vmatpush2.msra.mxu0 0.0
    %1972 = vmatprep.subr.mxu0 0.0
    %1973 = vmatpush2.msra.mxu0 0.0
    %1974 = vmatprep.subr.mxu0 0.0
    %1975 = vmatpush2.msra.mxu0 0.0
    %1976 = vmatprep.subr.mxu0 0.0
    %1977 = vmatpush2.msra.mxu0 0.0
    %1978 = vmatprep.subr.mxu0 0.0
    %1979 = vmatpush2.msra.mxu0 0.0
    %1980 = vmatprep.subr.mxu0 0.0
    %1981 = vmatpush2.msra.mxu0 0.0
    %1982 = vmatprep.subr.mxu0 0.0
    %1983 = vmatpush2.msra.mxu0 0.0
    %1984 = vmatprep.mubr.f32.mxu0 0.0
    %1985 = vmatmul.mubr.f32.gmra.mxu0 %v1915
    %v1986 = vpop.f32.mrf.mxu0
    %v1987 = vadd.f32 %v1912, %v1986
    %v1988 = vpop.f32.mrf.mxu0
    %1989 = vmatprep.mubr.f32.mxu0 0.0
    %1990 = vmatmul.mubr.f32.gmra.mxu0 %v1918
    %v1991 = vpop.f32.mrf.mxu0
    %v1992 = vadd.f32 %v1912, %v1991
    %v1993 = vpop.f32.mrf.mxu0
    %1994 = vdwg.mxu0
    %v1995 = vmax.f32 %v1987, 0.0
    %v1996 = vmax.f32 %v1992, 0.0
    %v1997 = vld [vmem:[%s10] sm:$0xff]
    %v1998 = vld [vmem:[%s10 + $0x8] sm:$0xff]
    %v1999 = vld [vmem:[%s10 + $0x10] sm:$0xff]
    %v2000 = vld [vmem:[%s10 + $0x18] sm:$0xff]
    %v2001 = vld [vmem:[%s10 + $0x20] sm:$0xff]
    %v2002 = vld [vmem:[%s10 + $0x28] sm:$0xff]
    %v2003 = vld [vmem:[%s10 + $0x30] sm:$0xff]
    %v2004 = vld [vmem:[%s10 + $0x38] sm:$0xff]
    %v2005 = vld [vmem:[%s10 + $0x40] sm:$0xff]
    %v2006 = vld [vmem:[%s10 + $0x48] sm:$0xff]
    %v2007 = vld [vmem:[%s10 + $0x50] sm:$0xff]
    %v2008 = vld [vmem:[%s10 + $0x58] sm:$0xff]
    %v2009 = vld [vmem:[%s10 + $0x60] sm:$0xff]
    %v2010 = vld [vmem:[%s10 + $0x68] sm:$0xff]
    %v2011 = vld [vmem:[%s10 + $0x70] sm:$0xff]
    %v2012 = vld [vmem:[%s10 + $0x78] sm:$0xff]
    %v2013 = vld [vmem:[%s11] sm:$0x1]
    %v2015 = vlaneseq
    %v2016 = vshrl.u32 %v2015, 7
    %v2017 = vsub.s32 0, %v2016
    %v2018 = vrot.slane %v2013, %v2017
    %2020 = vmatprep.subr.mxu0 0.0
    %2021 = vmatpush1.msra.mxu0 %v2012
    %2022 = vmatprep.subr.mxu0 0.0
    %2023 = vmatpush1.msra.mxu0 %v2011
    %2024 = vmatprep.subr.mxu0 0.0
    %2025 = vmatpush1.msra.mxu0 %v2010
    %2026 = vmatprep.subr.mxu0 0.0
    %2027 = vmatpush1.msra.mxu0 %v2009
    %2028 = vmatprep.subr.mxu0 0.0
    %2029 = vmatpush1.msra.mxu0 %v2008
    %2030 = vmatprep.subr.mxu0 0.0
    %2031 = vmatpush1.msra.mxu0 %v2007
    %2032 = vmatprep.subr.mxu0 0.0
    %2033 = vmatpush1.msra.mxu0 %v2006
    %2034 = vmatprep.subr.mxu0 0.0
    %2035 = vmatpush1.msra.mxu0 %v2005
    %2036 = vmatprep.subr.mxu0 0.0
    %2037 = vmatpush1.msra.mxu0 %v2004
    %2038 = vmatprep.subr.mxu0 0.0
    %2039 = vmatpush1.msra.mxu0 %v2003
    %2040 = vmatprep.subr.mxu0 0.0
    %2041 = vmatpush1.msra.mxu0 %v2002
    %2042 = vmatprep.subr.mxu0 0.0
    %2043 = vmatpush1.msra.mxu0 %v2001
    %2044 = vmatprep.subr.mxu0 0.0
    %2045 = vmatpush1.msra.mxu0 %v2000
    %2046 = vmatprep.subr.mxu0 0.0
    %2047 = vmatpush1.msra.mxu0 %v1999
    %2048 = vmatprep.subr.mxu0 0.0
    %2049 = vmatpush1.msra.mxu0 %v1998
    %2050 = vmatprep.subr.mxu0 0.0
    %2051 = vmatpush1.msra.mxu0 %v1997
    %2052 = vmatprep.subr.mxu0 0.0
    %2053 = vmatpush2.msra.mxu0 0.0
    %2054 = vmatprep.subr.mxu0 0.0
    %2055 = vmatpush2.msra.mxu0 0.0
    %2056 = vmatprep.subr.mxu0 0.0
    %2057 = vmatpush2.msra.mxu0 0.0
    %2058 = vmatprep.subr.mxu0 0.0
    %2059 = vmatpush2.msra.mxu0 0.0
    %2060 = vmatprep.subr.mxu0 0.0
    %2061 = vmatpush2.msra.mxu0 0.0
    %2062 = vmatprep.subr.mxu0 0.0
    %2063 = vmatpush2.msra.mxu0 0.0
    %2064 = vmatprep.subr.mxu0 0.0
    %2065 = vmatpush2.msra.mxu0 0.0
    %2066 = vmatprep.subr.mxu0 0.0
    %2067 = vmatpush2.msra.mxu0 0.0
    %2068 = vmatprep.subr.mxu0 0.0
    %2069 = vmatpush2.msra.mxu0 0.0
    %2070 = vmatprep.subr.mxu0 0.0
    %2071 = vmatpush2.msra.mxu0 0.0
    %2072 = vmatprep.subr.mxu0 0.0
    %2073 = vmatpush2.msra.mxu0 0.0
    %2074 = vmatprep.subr.mxu0 0.0
    %2075 = vmatpush2.msra.mxu0 0.0
    %2076 = vmatprep.subr.mxu0 0.0
    %2077 = vmatpush2.msra.mxu0 0.0
    %2078 = vmatprep.subr.mxu0 0.0
    %2079 = vmatpush2.msra.mxu0 0.0
    %2080 = vmatprep.subr.mxu0 0.0
    %2081 = vmatpush2.msra.mxu0 0.0
    %2082 = vmatprep.subr.mxu0 0.0
    %2083 = vmatpush2.msra.mxu0 0.0
    %2084 = vmatprep.mubr.f32.mxu0 0.0
    %2085 = vmatmul.mubr.f32.gmra.mxu0 %v1995
    %v2086 = vpop.f32.mrf.mxu0
    %v2087 = vadd.f32 %v2018, %v2086
    %v2088 = vpop.f32.mrf.mxu0
    %2089 = vmatprep.mubr.f32.mxu0 0.0
    %2090 = vmatmul.mubr.f32.gmra.mxu0 %v1996
    %v2091 = vpop.f32.mrf.mxu0
    %v2092 = vadd.f32 %v2018, %v2091
    %v2093 = vpop.f32.mrf.mxu0
    %2094 = vdwg.mxu0
    %v2095 = vadd.f32 %v1857, %v2087
    %v2096 = vadd.f32 %v1858, %v2092
    %v2098 = vrot.slane %v2095, 1
    %2099 = vrot.lane.b32.xlu0 %v2098, 32
    %v2100 = vpop.permute.xlu0 %2099
    %v2102 = vrot.slane %v2095, 2
    %2103 = vrot.lane.b32.xlu0 %v2102, 64
    %v2104 = vpop.permute.xlu0 %2103
    %v2106 = vrot.slane %v2095, 3
    %2107 = vrot.lane.b32.xlu0 %v2106, 96
    %v2108 = vpop.permute.xlu0 %2107
    %v2110 = vrot.slane %v2095, 4
    %v2112 = vrot.slane %v2095, 5
    %2113 = vrot.lane.b32.xlu0 %v2112, 32
    %v2114 = vpop.permute.xlu0 %2113
    %v2116 = vrot.slane %v2095, 6
    %2117 = vrot.lane.b32.xlu0 %v2116, 64
    %v2118 = vpop.permute.xlu0 %2117
    %v2120 = vrot.slane %v2095, 7
    %2121 = vrot.lane.b32.xlu0 %v2120, 96
    %v2122 = vpop.permute.xlu0 %2121
    %v2124 = vsel %vm46, %v2095, %v2100
    %vm2125 = vcmask 523264
    %v2126 = vsel %vm2125, %v2124, %v2104
    %vm2127 = vcmask 785408
    %v2128 = vsel %vm2127, %v2126, %v2108
    %v2129 = vsel %vm46, %v2110, %v2114
    %v2130 = vsel %vm2125, %v2129, %v2118
    %v2131 = vsel %vm2127, %v2130, %v2122
    %v2133 = vrot.slane %v2096, 1
    %2134 = vrot.lane.b32.xlu0 %v2133, 32
    %v2135 = vpop.permute.xlu0 %2134
    %v2137 = vrot.slane %v2096, 2
    %2138 = vrot.lane.b32.xlu0 %v2137, 64
    %v2139 = vpop.permute.xlu0 %2138
    %v2141 = vrot.slane %v2096, 3
    %2142 = vrot.lane.b32.xlu0 %v2141, 96
    %v2143 = vpop.permute.xlu0 %2142
    %v2145 = vrot.slane %v2096, 4
    %v2147 = vrot.slane %v2096, 5
    %2148 = vrot.lane.b32.xlu0 %v2147, 32
    %v2149 = vpop.permute.xlu0 %2148
    %v2151 = vrot.slane %v2096, 6
    %2152 = vrot.lane.b32.xlu0 %v2151, 64
    %v2153 = vpop.permute.xlu0 %2152
    %v2155 = vrot.slane %v2096, 7
    %2156 = vrot.lane.b32.xlu0 %v2155, 96
    %v2157 = vpop.permute.xlu0 %2156
    %v2159 = vsel %vm46, %v2096, %v2135
    %v2160 = vsel %vm2125, %v2159, %v2139
    %v2161 = vsel %vm2127, %v2160, %v2143
    %v2162 = vsel %vm46, %v2145, %v2149
    %v2163 = vsel %vm2125, %v2162, %v2153
    %v2164 = vsel %vm2127, %v2163, %v2157
    %v2167 = vrot.slane %v2161, 7
    %v2168 = vrot.slane %v2164, 7
    %vm2171 = vcmask 1040384
    %v2172 = vsel %vm2171, %v2128, %v2167
    %v2173 = vsel %vm2171, %v2131, %v2168
    %v2176 = vcombine.low %v2172, %v2173
    %v2178 = vunpack.c.l.s4 1983009808
    %v2179 = vunpack.c.0.s8 %v2178
    %v2180 = vlaneseq
    %v2181 = vshrl.u32 %v2180, 7
    %v2182 = vsub.s32 %v2179, %v2181
    %v2183 = vrot.slane %v2176, %v2182
    %2185 = vst [vmem:[#allocation2] sm:$0xf] %v2183
    // Predicated region
    $region50: #{tpu_custom_call.1} parent=1 // pred_check
      _
    $region51: #{tpu_custom_call.1} parent=1 // pred_check_branch
      %2187 = sbr.rel (0) target = $region53
    $region52: #{tpu_custom_call.1} parent=1 // pred_region
      %s2189 = ssub.s32 64, 64
      %2190 = vsyncadd [#allocation3], %s2189
      %s2192 = sshll.u32 [#allocation2], 4
      %s2193 = int_to_ptr.vmem [resolvable:$true] %s2192
      %2195 = dma.vmem_to_hbm [thread:$0]  %s2193, 64, %s12, [#allocation3]
    $region53: #{tpu_custom_call.1} parent=1 // pred_fallthru
      _
    // Predicated region
    $region54: #{tpu_custom_call.1} parent=1 // pred_check
      _
    $region55: #{tpu_custom_call.1} parent=1 // pred_check_branch
      %2197 = sbr.rel (0) target = $region57
    $region56: #{tpu_custom_call.1} parent=1 // pred_region
      %2198 = dma.done [#allocation3], 64
    $region57: #{tpu_custom_call.1} parent=1 // pred_fallthru
      _
    %2199 = vsyncpa [#allocation3], 1

</llo_original>
